<compile_context>
chip_gen: v6e
topology: v6e:2x2x1
jax: 0.10.0
libtpu: 0.0.40
codegen_flags: <defaults>
</compile_context>

<pallas_src>
import math
import numpy as np

import jax
import jax.numpy as jnp
from jax.experimental import pallas as pl
from jax.experimental.pallas import tpu as pltpu

# -----------------------------------------------------------------------------
# ANI AEV constants (module defaults)
# -----------------------------------------------------------------------------
NUM_ELEMENTS = 4                       # ['H', 'C', 'N', 'O']
RCR, ETAR = 5.2, 16.0
SHFR = jnp.asarray(np.linspace(0.9, RCR - (RCR - 0.9) / 16, 16), jnp.float32)   # 16 shifts
RCA, ETAA = 3.5, 8.0
SHFA = jnp.asarray(np.linspace(0.9, RCA - (RCA - 0.9) / 4, 4), jnp.float32)     # 4 shifts
ZETA = 32.0
SHFZ = jnp.asarray(np.linspace(np.pi / 8 / 2, np.pi - np.pi / 8 / 2, 8), jnp.float32)  # 8 shifts

RADIAL_SUB = SHFR.shape[0]                      # 16
ANGULAR_SUB = SHFZ.shape[0] * SHFA.shape[0]     # 32
HIDDEN = (64, 32, 16)
OUTPUT_CHANNELS = 1

CELU_ALPHA = 0.1
CELU_INV_ALPHA = 1.0 / CELU_ALPHA               # precomputed 1/alpha (frees EUP recip)


def _round_up(x, m):
    return (x + m - 1) // m * m


def _triu_index(num_species):
    tri = np.zeros((num_species, num_species), dtype=np.int32)
    idx = 0
    for s1 in range(num_species):
        for s2 in range(s1, num_species):
            tri[s1, s2] = idx
            tri[s2, s1] = idx
            idx += 1
    return jnp.asarray(tri)


def aev_length(num_species):
    n_pairs = num_species * (num_species + 1) // 2
    return num_species * RADIAL_SUB + n_pairs * ANGULAR_SUB


def _celu(x):
    # CELU(alpha=0.1); multiply by 1/alpha instead of dividing (VPU mul, no recip).
    return jnp.where(x > 0, x, CELU_ALPHA * (jnp.exp(x * CELU_INV_ALPHA) - 1.0))


# -----------------------------------------------------------------------------
# AEV computation (plain-JAX glue; dense pairwise/triple formulation)
# -----------------------------------------------------------------------------
def compute_aev(species, coords, num_species):
    """species: (N, A) int32 (>=0 valid, -1 pad), coords: (N, A, 3) f32
       returns (N, A, aev_length(num_species)) f32"""
    species = species.astype(jnp.int32)
    coords = coords.astype(jnp.float32)
    N, A = species.shape

    valid = species >= 0                                      # (N, A)
    vec = coords[:, None, :, :] - coords[:, :, None, :]       # vec[n,i,j] = r_j - r_i
    dist2 = jnp.sum(vec * vec, axis=-1)                       # (N, A, A)
    eye = jnp.eye(A, dtype=bool)
    dist = jnp.sqrt(dist2 + jnp.where(eye, 1.0, 0.0)[None])   # diag -> 1 (masked anyway)

    pair_valid = valid[:, :, None] & valid[:, None, :] & (~eye)[None]

    # ---- radial part ----
    mask_r = pair_valid & (dist <= RCR)
    fc_r = 0.5 * jnp.cos(jnp.pi * dist / RCR) + 0.5
    rad = 0.25 * jnp.exp(-ETAR * (dist[..., None] - SHFR) ** 2) * fc_r[..., None]
    rad = rad * mask_r[..., None].astype(jnp.float32)                       # (N,A,A,16)
    onehot = jax.nn.one_hot(species, num_species, dtype=jnp.float32)        # (N,A,S)
    radial_aev = jnp.einsum('nijr,njs->nisr', rad, onehot)
    radial_aev = radial_aev.reshape(N, A, num_species * RADIAL_SUB)

    # ---- angular part ----
    mask_a = pair_valid & (dist <= RCA)                                     # neighbors of i
    jk_lt = jnp.arange(A)[:, None] < jnp.arange(A)[None, :]
    trip_mask = (mask_a[:, :, :, None] & mask_a[:, :, None, :] & jk_lt[None, None])

    dot = jnp.einsum('nijc,nikc->nijk', vec, vec)                           # (N,A,A,A)
    dij = dist[:, :, :, None]
    dik = dist[:, :, None, :]
    denom = jnp.maximum(dij * dik, 1e-12)          # guard: coincident atoms -> no 0/0 NaN
    cosang = 0.95 * dot / denom
    theta = jnp.arccos(cosang)
    fcj = 0.5 * jnp.cos(jnp.pi * dij / RCA) + 0.5
    fck = 0.5 * jnp.cos(jnp.pi * dik / RCA) + 0.5
    avg_d = 0.5 * (dij + dik)

    f1 = ((1.0 + jnp.cos(theta[..., None] - SHFZ)) / 2.0) ** ZETA           # (N,A,A,A,8)
    f2 = jnp.exp(-ETAA * (avg_d[..., None] - SHFA) ** 2)                    # (N,A,A,A,4)
    ang = 2.0 * f1[..., :, None] * f2[..., None, :] * (fcj * fck)[..., None, None]
    ang = ang * trip_mask[..., None, None].astype(jnp.float32)
    ang = ang.reshape(N, A, A, A, ANGULAR_SUB)

    n_pairs = num_species * (num_species + 1) // 2
    triu = _triu_index(num_species)
    sp_safe = jnp.clip(species, 0, num_species - 1)
    pidx = triu[sp_safe[:, :, None], sp_safe[:, None, :]]                   # (N,A,A)
    pair_onehot = jax.nn.one_hot(pidx, n_pairs, dtype=jnp.float32)          # (N,A,A,P)
    angular_aev = jnp.einsum('nijka,njkp->nipa', ang, pair_onehot)
    angular_aev = angular_aev.reshape(N, A, n_pairs * ANGULAR_SUB)

    return jnp.concatenate([radial_aev, angular_aev], axis=-1)


# -----------------------------------------------------------------------------
# Fused Pallas kernel: all three MLP heads + atom-sum reduction
# -----------------------------------------------------------------------------
def _fused_mlp_kernel(net_id_ref, aev_ref, mask_ref,
                      w1_ref, b1_ref, w2_ref, b2_ref,
                      w3_ref, b3_ref, w4_ref, b4_ref, out_ref):
    # net_id_ref is consumed by the index_maps only.
    del net_id_ref
    R = aev_ref.shape[0]            # BN * Amax atom rows
    BN = out_ref.shape[0]           # molecules per block
    Amax = R // BN

    x = aev_ref[...]                                               # (R, Dpad) bf16
    h = _celu(jnp.dot(x, w1_ref[0], preferred_element_type=jnp.float32) + b1_ref[0])
    h = _celu(jnp.dot(h.astype(jnp.bfloat16), w2_ref[0],
                      preferred_element_type=jnp.float32) + b2_ref[0])
    h = _celu(jnp.dot(h.astype(jnp.bfloat16), w3_ref[0],
                      preferred_element_type=jnp.float32) + b3_ref[0])   # (R, 16) f32

    m = mask_ref[...]                                              # (R, 1) f32 atom mask
    h = h * m
    h_sum = jnp.sum(h.reshape(BN, Amax, h.shape[-1]), axis=1)      # (BN, 16)
    n_valid = jnp.sum(m.reshape(BN, Amax, 1), axis=1)              # (BN, 1)

    # Final (16 -> padded 128) layer folded after the atom sum; bias counted
    # once per valid atom.
    y = jnp.dot(h_sum.astype(jnp.bfloat16), w4_ref[0],
                preferred_element_type=jnp.float32)
    out_ref[...] = y + n_valid * b4_ref[0]                         # (BN, 128) f32


def fused_mlp_heads(nets, aevs, output_channels=OUTPUT_CHANNELS, use_pallas=True,
                    rows_target=1024):
    """nets: list (len 3) of layer lists [(W,b), x4]; aevs: list of (N, A_k, D_k) f32.
       Returns per-head per-molecule energies, shape (len(nets), N, output_channels)."""
    n_nets = len(nets)
    N = aevs[0].shape[0]
    Amax = max(a.shape[1] for a in aevs)
    d_in_max = max(a.shape[2] for a in aevs)
    d_pad = _round_up(d_in_max, 128)
    oc_pad = 128
    h1 = nets[0][1][0].shape[0]
    h2 = nets[0][2][0].shape[0]
    h3 = nets[0][3][0].shape[0]

    # BN molecules per grid block (multiple of 8 so the (BN,128) output block is
    # (8,128)-aligned).  rows_target=1024 keeps the double-buffered bf16 AEV
    # block at ~2 x BN*Amax*d_pad*2B  <~ 6 MiB -> safe on v7x (64 MiB VMEM);
    # v5e/v6e can raise rows_target for even bigger tiles.
    BN = max(8, min((max(rows_target // Amax, 8) // 8) * 8, _round_up(N, 8)))
    Mseg = _round_up(N, BN)              # molecules per network segment (padded)
    M_pad = n_nets * Mseg
    n_blocks = M_pad // BN
    R = BN * Amax

    # ---- assemble lane-padded bf16 AEV slab + f32 atom mask (3 head segments) ----
    aev_p = jnp.zeros((M_pad, Amax, d_pad), jnp.bfloat16)
    mask_p = jnp.zeros((M_pad, Amax, 1), jnp.float32)
    for k, a in enumerate(aevs):
        Ak, Dk = a.shape[1], a.shape[2]
        aev_p = aev_p.at[k * Mseg:k * Mseg + N, :Ak, :Dk].set(a.astype(jnp.bfloat16))
        mask_p = mask_p.at[k * Mseg:k * Mseg + N, :Ak, :].set(1.0)
    aev_flat = aev_p.reshape(M_pad * Amax, d_pad)       # (rows, d_pad) bf16
    mask_flat = mask_p.reshape(M_pad * Amax, 1)         # (rows, 1)     f32

    # ---- stacked per-net weights (zero-padded to the common feature width) ----
    w1s = jnp.zeros((n_nets, d_pad, h1), jnp.bfloat16)
    b1s = jnp.zeros((n_nets, 1, h1), jnp.float32)
    w2s = jnp.zeros((n_nets, h1, h2), jnp.bfloat16)
    b2s = jnp.zeros((n_nets, 1, h2), jnp.float32)
    w3s = jnp.zeros((n_nets, h2, h3), jnp.bfloat16)
    b3s = jnp.zeros((n_nets, 1, h3), jnp.float32)
    w4s = jnp.zeros((n_nets, h3, oc_pad), jnp.bfloat16)
    b4s = jnp.zeros((n_nets, 1, oc_pad), jnp.float32)
    for k, layers in enumerate(nets):
        (W1, B1), (W2, B2), (W3, B3), (W4, B4) = layers
        w1s = w1s.at[k, :W1.shape[0], :].set(W1.astype(jnp.bfloat16))
        b1s = b1s.at[k].set(B1.astype(jnp.float32))
        w2s = w2s.at[k].set(W2.astype(jnp.bfloat16))
        b2s = b2s.at[k].set(B2.astype(jnp.float32))
        w3s = w3s.at[k].set(W3.astype(jnp.bfloat16))
        b3s = b3s.at[k].set(B3.astype(jnp.float32))
        w4s = w4s.at[k, :, :W4.shape[1]].set(W4.astype(jnp.bfloat16))
        b4s = b4s.at[k, :, :B4.shape[1]].set(B4.astype(jnp.float32))

    # per-block network id (scalar prefetch -> weight index_maps)
    net_id = jnp.asarray(np.repeat(np.arange(n_nets, dtype=np.int32), Mseg // BN))

    if use_pallas:
        out = pl.pallas_call(
            _fused_mlp_kernel,
            out_shape=jax.ShapeDtypeStruct((M_pad, oc_pad), jnp.float32),
            grid_spec=pltpu.PrefetchScalarGridSpec(
                num_scalar_prefetch=1,
                grid=(n_blocks,),
                in_specs=[
                    pl.BlockSpec((R, d_pad), lambda n, nid: (n, 0)),
                    pl.BlockSpec((R, 1), lambda n, nid: (n, 0)),
                    pl.BlockSpec((1, d_pad, h1), lambda n, nid: (nid[n], 0, 0)),
                    pl.BlockSpec((1, 1, h1), lambda n, nid: (nid[n], 0, 0)),
                    pl.BlockSpec((1, h1, h2), lambda n, nid: (nid[n], 0, 0)),
                    pl.BlockSpec((1, 1, h2), lambda n, nid: (nid[n], 0, 0)),
                    pl.BlockSpec((1, h2, h3), lambda n, nid: (nid[n], 0, 0)),
                    pl.BlockSpec((1, 1, h3), lambda n, nid: (nid[n], 0, 0)),
                    pl.BlockSpec((1, h3, oc_pad), lambda n, nid: (nid[n], 0, 0)),
                    pl.BlockSpec((1, 1, oc_pad), lambda n, nid: (nid[n], 0, 0)),
                ],
                out_specs=pl.BlockSpec((BN, oc_pad), lambda n, nid: (n, 0)),
            ),
            compiler_params=pltpu.CompilerParams(
                dimension_semantics=("parallel",)),
        )(net_id, aev_flat, mask_flat, w1s, b1s, w2s, b2s, w3s, b3s, w4s, b4s)
    else:
        # Plain-JAX mimic of the exact kernel numerics (validation path).
        outs = []
        for k in range(n_nets):
            rows = slice(k * Mseg * Amax, (k + 1) * Mseg * Amax)
            xk = aev_flat[rows]
            mk = mask_flat[rows]
            h = _celu(jnp.dot(xk, w1s[k], preferred_element_type=jnp.float32) + b1s[k])
            h = _celu(jnp.dot(h.astype(jnp.bfloat16), w2s[k],
                              preferred_element_type=jnp.float32) + b2s[k])
            h = _celu(jnp.dot(h.astype(jnp.bfloat16), w3s[k],
                              preferred_element_type=jnp.float32) + b3s[k])
            h = h * mk
            hs = jnp.sum(h.reshape(Mseg, Amax, -1), axis=1)
            nv = jnp.sum(mk.reshape(Mseg, Amax, 1), axis=1)
            yk = jnp.dot(hs.astype(jnp.bfloat16), w4s[k],
                         preferred_element_type=jnp.float32) + nv * b4s[k]
            outs.append(yk)
        out = jnp.concatenate(outs, axis=0)

    e = out[:, :output_channels].reshape(n_nets, Mseg, output_channels)[:, :N]
    return e                                   # (n_nets, N, OC)


# -----------------------------------------------------------------------------
# ChargeTransferStateNNP forward
# -----------------------------------------------------------------------------
def _split_monomers(species, coordinates, belongings):
    bel_np = np.asarray(belongings)
    natom1 = int((bel_np[0] == 1).sum())
    natom2 = int((bel_np[0] == 2).sum())
    idx1 = np.stack([np.nonzero(bel_np[n] == 1)[0] for n in range(bel_np.shape[0])])
    idx2 = np.stack([np.nonzero(bel_np[n] == 2)[0] for n in range(bel_np.shape[0])])
    assert idx1.shape[1] == natom1 and idx2.shape[1] == natom2
    idx1 = jnp.asarray(idx1)
    idx2 = jnp.asarray(idx2)
    species1 = jnp.take_along_axis(species, idx1, axis=1)
    species2 = jnp.take_along_axis(species, idx2, axis=1)
    coord1 = jnp.take_along_axis(coordinates, idx1[..., None], axis=1)
    coord2 = jnp.take_along_axis(coordinates, idx2[..., None], axis=1)
    return (species1, coord1), (species2, coord2)


def _build_head_aevs(species, coordinates, belongings, approx=None):
    (sp1, c1), (sp2, c2) = _split_monomers(species, coordinates, belongings)
    aev_cat = compute_aev(sp1, c1, NUM_ELEMENTS)                       # (N, A1, 384)
    aev_an = compute_aev(sp2, c2, NUM_ELEMENTS)                        # (N, A2, 384)
    sp_int = species + (belongings - 1) * NUM_ELEMENTS                 # dimer AEV species
    aev_int = compute_aev(sp_int, coordinates, 2 * NUM_ELEMENTS)       # (N, A, 1280)
    if approx is None:
        app = jnp.zeros(aev_int.shape[:-1] + (1,), aev_int.dtype)
    else:
        app = approx[..., None] if approx.ndim == 2 else approx
        app = app.astype(aev_int.dtype)
    aev_int = jnp.concatenate([aev_int, app], axis=-1)                 # (N, A, 1281)
    return aev_cat, aev_an, aev_int


def charge_transfer_forward(params, species, coordinates, belongings, approx=None,
                            use_pallas=True):
    """species (N,A) int32, coordinates (N,A,3) f32, belongings (N,A) int32 in {1,2},
       approx (N,A) f32 optional.  Returns (N, 1) energies."""
    aev_cat, aev_an, aev_int = _build_head_aevs(species, coordinates, belongings, approx)
    nets = [params['cation'], params['anion'], params['interaction']]
    e = fused_mlp_heads(nets, [aev_cat, aev_an, aev_int], use_pallas=use_pallas)
    return e[0] + e[1] + e[2]


def _mlp_reference_f32(layers, aev):
    h = aev
    for i, (w, b) in enumerate(layers):
        h = jnp.einsum('nad,dh->nah', h, w,
                       precision=jax.lax.Precision.HIGHEST) + b
        if i < len(layers) - 1:
            h = _celu(h)
    return h.sum(axis=1)


def charge_transfer_forward_reference(params, species, coordinates, belongings, approx=None):
    """Full-precision (f32, HIGHEST) plain-JAX reproduction of the module math."""
    aev_cat, aev_an, aev_int = _build_head_aevs(species, coordinates, belongings, approx)
    return (_mlp_reference_f32(params['cation'], aev_cat)
            + _mlp_reference_f32(params['anion'], aev_an)
            + _mlp_reference_f32(params['interaction'], aev_int))


# -----------------------------------------------------------------------------
# Parameter init (matches ANINNP.init_params: xavier_normal weights, zero bias)
# -----------------------------------------------------------------------------
def init_linear(key, din, dout):
    std = math.sqrt(2.0 / (din + dout))
    w = std * jax.random.normal(key, (din, dout), jnp.float32)
    b = jnp.zeros((1, dout), jnp.float32)
    return w, b


def init_model(key, din, hidden=HIDDEN, dout=OUTPUT_CHANNELS):
    dims = [din] + list(hidden) + [dout]
    keys = jax.random.split(key, len(dims) - 1)
    return [init_linear(k, a, b) for k, a, b in zip(keys, dims[:-1], dims[1:])]


def init_charge_transfer_params(key):
    k1, k2, k3 = jax.random.split(key, 3)
    monomer_dim = aev_length(NUM_ELEMENTS)                 # 384 (approx_channels=0)
    inter_dim = aev_length(2 * NUM_ELEMENTS) + 1           # 1280 + 1 approx channel
    return {
        'cation': init_model(k1, monomer_dim),
        'anion': init_model(k2, monomer_dim),
        'interaction': init_model(k3, inter_dim),
    }


# -----------------------------------------------------------------------------
if __name__ == "__main__":
    key = jax.random.PRNGKey(0)
    k_par, k_sp, k_xyz, k_app = jax.random.split(key, 4)

    N, A = 2, 8          # 2 dimers, 4 atoms per monomer
    params = init_charge_transfer_params(k_par)

    species = jax.random.randint(k_sp, (N, A), 0, NUM_ELEMENTS, dtype=jnp.int32)
    coordinates = jax.random.uniform(k_xyz, (N, A, 3), jnp.float32, 0.0, 4.0)
    belongings = jnp.asarray(np.tile(np.array([1, 1, 1, 1, 2, 2, 2, 2], np.int32), (N, 1)))
    approx = jax.random.normal(k_app, (N, A), jnp.float32)

    out = jax.block_until_ready(
        charge_transfer_forward(params, species, coordinates, belongings, approx,
                                use_pallas=True))
    assert out.shape == (N, OUTPUT_CHANNELS), out.shape
    assert bool(jnp.all(jnp.isfinite(out)))

    # 1) Structural check: identical bf16/f32 mixed-precision math in plain JAX.
    ref_struct = jax.block_until_ready(
        charge_transfer_forward(params, species, coordinates, belongings, approx,
                                use_pallas=False))
    np.testing.assert_allclose(np.asarray(out), np.asarray(ref_struct),
                               rtol=1e-3, atol=1e-3)

    # 2) Full-precision module reference (f32, Precision.HIGHEST).  The kernel
    #    runs the AEV stream / matmuls in bf16, hence the looser tolerance.
    ref_f32 = jax.block_until_ready(
        charge_transfer_forward_reference(params, species, coordinates, belongings, approx))
    np.testing.assert_allclose(np.asarray(out), np.asarray(ref_f32),
                               rtol=2e-2, atol=2e-2)

    print("KERNEL_OK")
</pallas_src>

<mosaic_0001>
module attributes {stable_mosaic.version = 11 : i64} {
  func.func @_fused_mlp_kernel(%arg0: i32, %arg1: memref<3xi32, #tpu.memory_space<smem>>, %arg2: memref<64x1408xbf16, #tpu.memory_space<vmem>>, %arg3: memref<64x1xf32, #tpu.memory_space<vmem>>, %arg4: memref<1x1408x64xbf16, #tpu.memory_space<vmem>>, %arg5: memref<1x1x64xf32, #tpu.memory_space<vmem>>, %arg6: memref<1x64x32xbf16, #tpu.memory_space<vmem>>, %arg7: memref<1x1x32xf32, #tpu.memory_space<vmem>>, %arg8: memref<1x32x16xbf16, #tpu.memory_space<vmem>>, %arg9: memref<1x1x16xf32, #tpu.memory_space<vmem>>, %arg10: memref<1x16x128xbf16, #tpu.memory_space<vmem>>, %arg11: memref<1x1x128xf32, #tpu.memory_space<vmem>>, %arg12: memref<8x128xf32, #tpu.memory_space<vmem>>) attributes {dimension_semantics = [#tpu.dimension_semantics<parallel>], iteration_bounds = array<i64: 3>, scalar_prefetch = 1 : i64, scratch_operands = 0 : i64, tpu.core_type = #tpu.core_type<tc>, window_params = [{transform_indices = @transform_0, window_bounds = array<i64: 64, 1408>}, {transform_indices = @transform_1, window_bounds = array<i64: 64, 1>}, {transform_indices = @transform_2, window_bounds = array<i64: 1, 1408, 64>}, {transform_indices = @transform_3, window_bounds = array<i64: 1, 1, 64>}, {transform_indices = @transform_4, window_bounds = array<i64: 1, 64, 32>}, {transform_indices = @transform_5, window_bounds = array<i64: 1, 1, 32>}, {transform_indices = @transform_6, window_bounds = array<i64: 1, 32, 16>}, {transform_indices = @transform_7, window_bounds = array<i64: 1, 1, 16>}, {transform_indices = @transform_8, window_bounds = array<i64: 1, 16, 128>}, {transform_indices = @transform_9, window_bounds = array<i64: 1, 1, 128>}, {transform_indices = @transform_10, window_bounds = array<i64: 8, 128>}]} {
    %c0 = arith.constant 0 : index
    %c0_0 = arith.constant 0 : index
    %0 = vector.load %arg2[%c0, %c0_0] : memref<64x1408xbf16, #tpu.memory_space<vmem>>, vector<64x1408xbf16>
    %c0_1 = arith.constant 0 : index
    %c0_2 = arith.constant 0 : index
    %c0_3 = arith.constant 0 : index
    %1 = vector.load %arg4[%c0_1, %c0_2, %c0_3] : memref<1x1408x64xbf16, #tpu.memory_space<vmem>>, vector<1x1408x64xbf16>
    %2 = vector.shape_cast %1 : vector<1x1408x64xbf16> to vector<1408x64xbf16>
    %cst = arith.constant dense<0.000000e+00> : vector<64x64xf32>
    %3 = tpu.matmul %0, %2, %cst {dimension_numbers = #tpu.dot_dimension_numbers<[1], [0], [0], [1], [0, 0, 1, 1], [], []>} : vector<64x1408xbf16>, vector<1408x64xbf16>, vector<64x64xf32> -> vector<64x64xf32>
    %c0_4 = arith.constant 0 : index
    %c0_5 = arith.constant 0 : index
    %c0_6 = arith.constant 0 : index
    %4 = vector.load %arg5[%c0_4, %c0_5, %c0_6] : memref<1x1x64xf32, #tpu.memory_space<vmem>>, vector<1x1x64xf32>
    %5 = vector.shape_cast %4 : vector<1x1x64xf32> to vector<1x64xf32>
    %6 = vector.broadcast %5 : vector<1x64xf32> to vector<64x64xf32>
    %7 = arith.addf %3, %6 : vector<64x64xf32>
    %cst_7 = arith.constant 0.000000e+00 : f32
    %8 = vector.broadcast %cst_7 : f32 to vector<64x64xf32>
    %9 = arith.cmpf ogt, %7, %8 : vector<64x64xf32>
    %cst_8 = arith.constant 1.000000e+01 : f32
    %10 = vector.broadcast %cst_8 : f32 to vector<64x64xf32>
    %11 = arith.mulf %7, %10 : vector<64x64xf32>
    %12 = math.exp %11 : vector<64x64xf32>
    %cst_9 = arith.constant 1.000000e+00 : f32
    %13 = vector.broadcast %cst_9 : f32 to vector<64x64xf32>
    %14 = arith.subf %12, %13 : vector<64x64xf32>
    %cst_10 = arith.constant 1.000000e-01 : f32
    %15 = vector.broadcast %cst_10 : f32 to vector<64x64xf32>
    %16 = arith.mulf %15, %14 : vector<64x64xf32>
    %17 = arith.select %9, %7, %16 : vector<64x64xi1>, vector<64x64xf32>
    %18 = arith.truncf %17 : vector<64x64xf32> to vector<64x64xbf16>
    %c0_11 = arith.constant 0 : index
    %c0_12 = arith.constant 0 : index
    %c0_13 = arith.constant 0 : index
    %19 = vector.load %arg6[%c0_11, %c0_12, %c0_13] : memref<1x64x32xbf16, #tpu.memory_space<vmem>>, vector<1x64x32xbf16>
    %20 = vector.shape_cast %19 : vector<1x64x32xbf16> to vector<64x32xbf16>
    %cst_14 = arith.constant dense<0.000000e+00> : vector<64x32xf32>
    %21 = tpu.matmul %18, %20, %cst_14 {dimension_numbers = #tpu.dot_dimension_numbers<[1], [0], [0], [1], [0, 0, 1, 1], [], []>} : vector<64x64xbf16>, vector<64x32xbf16>, vector<64x32xf32> -> vector<64x32xf32>
    %c0_15 = arith.constant 0 : index
    %c0_16 = arith.constant 0 : index
    %c0_17 = arith.constant 0 : index
    %22 = vector.load %arg7[%c0_15, %c0_16, %c0_17] : memref<1x1x32xf32, #tpu.memory_space<vmem>>, vector<1x1x32xf32>
    %23 = vector.shape_cast %22 : vector<1x1x32xf32> to vector<1x32xf32>
    %24 = vector.broadcast %23 : vector<1x32xf32> to vector<64x32xf32>
    %25 = arith.addf %21, %24 : vector<64x32xf32>
    %cst_18 = arith.constant 0.000000e+00 : f32
    %26 = vector.broadcast %cst_18 : f32 to vector<64x32xf32>
    %27 = arith.cmpf ogt, %25, %26 : vector<64x32xf32>
    %cst_19 = arith.constant 1.000000e+01 : f32
    %28 = vector.broadcast %cst_19 : f32 to vector<64x32xf32>
    %29 = arith.mulf %25, %28 : vector<64x32xf32>
    %30 = math.exp %29 : vector<64x32xf32>
    %cst_20 = arith.constant 1.000000e+00 : f32
    %31 = vector.broadcast %cst_20 : f32 to vector<64x32xf32>
    %32 = arith.subf %30, %31 : vector<64x32xf32>
    %cst_21 = arith.constant 1.000000e-01 : f32
    %33 = vector.broadcast %cst_21 : f32 to vector<64x32xf32>
    %34 = arith.mulf %33, %32 : vector<64x32xf32>
    %35 = arith.select %27, %25, %34 : vector<64x32xi1>, vector<64x32xf32>
    %36 = arith.truncf %35 : vector<64x32xf32> to vector<64x32xbf16>
    %c0_22 = arith.constant 0 : index
    %c0_23 = arith.constant 0 : index
    %c0_24 = arith.constant 0 : index
    %37 = vector.load %arg8[%c0_22, %c0_23, %c0_24] : memref<1x32x16xbf16, #tpu.memory_space<vmem>>, vector<1x32x16xbf16>
    %38 = vector.shape_cast %37 : vector<1x32x16xbf16> to vector<32x16xbf16>
    %cst_25 = arith.constant dense<0.000000e+00> : vector<64x16xf32>
    %39 = tpu.matmul %36, %38, %cst_25 {dimension_numbers = #tpu.dot_dimension_numbers<[1], [0], [0], [1], [0, 0, 1, 1], [], []>} : vector<64x32xbf16>, vector<32x16xbf16>, vector<64x16xf32> -> vector<64x16xf32>
    %c0_26 = arith.constant 0 : index
    %c0_27 = arith.constant 0 : index
    %c0_28 = arith.constant 0 : index
    %40 = vector.load %arg9[%c0_26, %c0_27, %c0_28] : memref<1x1x16xf32, #tpu.memory_space<vmem>>, vector<1x1x16xf32>
    %41 = vector.shape_cast %40 : vector<1x1x16xf32> to vector<1x16xf32>
    %42 = vector.broadcast %41 : vector<1x16xf32> to vector<64x16xf32>
    %43 = arith.addf %39, %42 : vector<64x16xf32>
    %cst_29 = arith.constant 0.000000e+00 : f32
    %44 = vector.broadcast %cst_29 : f32 to vector<64x16xf32>
    %45 = arith.cmpf ogt, %43, %44 : vector<64x16xf32>
    %cst_30 = arith.constant 1.000000e+01 : f32
    %46 = vector.broadcast %cst_30 : f32 to vector<64x16xf32>
    %47 = arith.mulf %43, %46 : vector<64x16xf32>
    %48 = math.exp %47 : vector<64x16xf32>
    %cst_31 = arith.constant 1.000000e+00 : f32
    %49 = vector.broadcast %cst_31 : f32 to vector<64x16xf32>
    %50 = arith.subf %48, %49 : vector<64x16xf32>
    %cst_32 = arith.constant 1.000000e-01 : f32
    %51 = vector.broadcast %cst_32 : f32 to vector<64x16xf32>
    %52 = arith.mulf %51, %50 : vector<64x16xf32>
    %53 = arith.select %45, %43, %52 : vector<64x16xi1>, vector<64x16xf32>
    %c0_33 = arith.constant 0 : index
    %c0_34 = arith.constant 0 : index
    %54 = vector.load %arg3[%c0_33, %c0_34] : memref<64x1xf32, #tpu.memory_space<vmem>>, vector<64x1xf32>
    %55 = vector.broadcast %54 : vector<64x1xf32> to vector<64x16xf32>
    %56 = arith.mulf %53, %55 : vector<64x16xf32>
    %57 = vector.shape_cast %56 : vector<64x16xf32> to vector<8x8x16xf32>
    %cst_35 = arith.constant dense<0.000000e+00> : vector<8x16xf32>
    %58 = vector.multi_reduction <add>, %57, %cst_35 [1] : vector<8x8x16xf32> to vector<8x16xf32>
    %59 = vector.shape_cast %54 : vector<64x1xf32> to vector<8x8x1xf32>
    %cst_36 = arith.constant dense<0.000000e+00> : vector<8x1xf32>
    %60 = vector.multi_reduction <add>, %59, %cst_36 [1] : vector<8x8x1xf32> to vector<8x1xf32>
    %61 = arith.truncf %58 : vector<8x16xf32> to vector<8x16xbf16>
    %c0_37 = arith.constant 0 : index
    %c0_38 = arith.constant 0 : index
    %c0_39 = arith.constant 0 : index
    %62 = vector.load %arg10[%c0_37, %c0_38, %c0_39] : memref<1x16x128xbf16, #tpu.memory_space<vmem>>, vector<1x16x128xbf16>
    %63 = vector.shape_cast %62 : vector<1x16x128xbf16> to vector<16x128xbf16>
    %cst_40 = arith.constant dense<0.000000e+00> : vector<8x128xf32>
    %64 = tpu.matmul %61, %63, %cst_40 {dimension_numbers = #tpu.dot_dimension_numbers<[1], [0], [0], [1], [0, 0, 1, 1], [], []>} : vector<8x16xbf16>, vector<16x128xbf16>, vector<8x128xf32> -> vector<8x128xf32>
    %c0_41 = arith.constant 0 : index
    %c0_42 = arith.constant 0 : index
    %c0_43 = arith.constant 0 : index
    %65 = vector.load %arg11[%c0_41, %c0_42, %c0_43] : memref<1x1x128xf32, #tpu.memory_space<vmem>>, vector<1x1x128xf32>
    %66 = vector.shape_cast %65 : vector<1x1x128xf32> to vector<1x128xf32>
    %67 = vector.broadcast %60 : vector<8x1xf32> to vector<8x128xf32>
    %68 = vector.broadcast %66 : vector<1x128xf32> to vector<8x128xf32>
    %69 = arith.mulf %67, %68 : vector<8x128xf32>
    %70 = arith.addf %64, %69 : vector<8x128xf32>
    %c0_44 = arith.constant 0 : index
    %c0_45 = arith.constant 0 : index
    %71 = vector.load %arg12[%c0_44, %c0_45] : memref<8x128xf32, #tpu.memory_space<vmem>>, vector<8x128xf32>
    tpu.vector_store %arg12[%c0_44, %c0_45], %70 {strides = array<i32>} : memref<8x128xf32, #tpu.memory_space<vmem>>, vector<8x128xf32>,
    return
  }
  func.func @transform_0(%arg0: i32, %arg1: memref<3xi32, #tpu.memory_space<smem>>) -> (i32, i32) {
    %c0_i32 = arith.constant 0 : i32
    %c0_i32_0 = arith.constant 0 : i32
    return %arg0, %c0_i32 : i32, i32
  }
  func.func @transform_1(%arg0: i32, %arg1: memref<3xi32, #tpu.memory_space<smem>>) -> (i32, i32) {
    %c0_i32 = arith.constant 0 : i32
    %c0_i32_0 = arith.constant 0 : i32
    return %arg0, %c0_i32 : i32, i32
  }
  func.func @transform_2(%arg0: i32, %arg1: memref<3xi32, #tpu.memory_space<smem>>) -> (i32, i32, i32) {
    %0 = arith.index_cast %arg0 : i32 to index
    %1 = memref.load %arg1[%0] : memref<3xi32, #tpu.memory_space<smem>>
    %c0_i32 = arith.constant 0 : i32
    %c0_i32_0 = arith.constant 0 : i32
    %c0_i32_1 = arith.constant 0 : i32
    return %1, %c0_i32, %c0_i32_0 : i32, i32, i32
  }
  func.func @transform_3(%arg0: i32, %arg1: memref<3xi32, #tpu.memory_space<smem>>) -> (i32, i32, i32) {
    %0 = arith.index_cast %arg0 : i32 to index
    %1 = memref.load %arg1[%0] : memref<3xi32, #tpu.memory_space<smem>>
    %c0_i32 = arith.constant 0 : i32
    %c0_i32_0 = arith.constant 0 : i32
    %c0_i32_1 = arith.constant 0 : i32
    return %1, %c0_i32, %c0_i32_0 : i32, i32, i32
  }
  func.func @transform_4(%arg0: i32, %arg1: memref<3xi32, #tpu.memory_space<smem>>) -> (i32, i32, i32) {
    %0 = arith.index_cast %arg0 : i32 to index
    %1 = memref.load %arg1[%0] : memref<3xi32, #tpu.memory_space<smem>>
    %c0_i32 = arith.constant 0 : i32
    %c0_i32_0 = arith.constant 0 : i32
    %c0_i32_1 = arith.constant 0 : i32
    return %1, %c0_i32, %c0_i32_0 : i32, i32, i32
  }
  func.func @transform_5(%arg0: i32, %arg1: memref<3xi32, #tpu.memory_space<smem>>) -> (i32, i32, i32) {
    %0 = arith.index_cast %arg0 : i32 to index
    %1 = memref.load %arg1[%0] : memref<3xi32, #tpu.memory_space<smem>>
    %c0_i32 = arith.constant 0 : i32
    %c0_i32_0 = arith.constant 0 : i32
    %c0_i32_1 = arith.constant 0 : i32
    return %1, %c0_i32, %c0_i32_0 : i32, i32, i32
  }
  func.func @transform_6(%arg0: i32, %arg1: memref<3xi32, #tpu.memory_space<smem>>) -> (i32, i32, i32) {
    %0 = arith.index_cast %arg0 : i32 to index
    %1 = memref.load %arg1[%0] : memref<3xi32, #tpu.memory_space<smem>>
    %c0_i32 = arith.constant 0 : i32
    %c0_i32_0 = arith.constant 0 : i32
    %c0_i32_1 = arith.constant 0 : i32
    return %1, %c0_i32, %c0_i32_0 : i32, i32, i32
  }
  func.func @transform_7(%arg0: i32, %arg1: memref<3xi32, #tpu.memory_space<smem>>) -> (i32, i32, i32) {
    %0 = arith.index_cast %arg0 : i32 to index
    %1 = memref.load %arg1[%0] : memref<3xi32, #tpu.memory_space<smem>>
    %c0_i32 = arith.constant 0 : i32
    %c0_i32_0 = arith.constant 0 : i32
    %c0_i32_1 = arith.constant 0 : i32
    return %1, %c0_i32, %c0_i32_0 : i32, i32, i32
  }
  func.func @transform_8(%arg0: i32, %arg1: memref<3xi32, #tpu.memory_space<smem>>) -> (i32, i32, i32) {
    %0 = arith.index_cast %arg0 : i32 to index
    %1 = memref.load %arg1[%0] : memref<3xi32, #tpu.memory_space<smem>>
    %c0_i32 = arith.constant 0 : i32
    %c0_i32_0 = arith.constant 0 : i32
    %c0_i32_1 = arith.constant 0 : i32
    return %1, %c0_i32, %c0_i32_0 : i32, i32, i32
  }
  func.func @transform_9(%arg0: i32, %arg1: memref<3xi32, #tpu.memory_space<smem>>) -> (i32, i32, i32) {
    %0 = arith.index_cast %arg0 : i32 to index
    %1 = memref.load %arg1[%0] : memref<3xi32, #tpu.memory_space<smem>>
    %c0_i32 = arith.constant 0 : i32
    %c0_i32_0 = arith.constant 0 : i32
    %c0_i32_1 = arith.constant 0 : i32
    return %1, %c0_i32, %c0_i32_0 : i32, i32, i32
  }
  func.func @transform_10(%arg0: i32, %arg1: memref<3xi32, #tpu.memory_space<smem>>) -> (i32, i32) {
    %c0_i32 = arith.constant 0 : i32
    %c0_i32_0 = arith.constant 0 : i32
    return %arg0, %c0_i32 : i32, i32
  }
}

</mosaic_0001>

<llo_original>
// kernel: tpu_custom_call.1
$region0: #{tpu_custom_call.1}
  #allocation0 [shape = 'u32[]', space=smem, size = 0x4, offset = 0x4, fixed_abs, tag = 'smem constant byte address 0x4 - core index']
  #allocation1 [shape = 'u32[144,128]{1,0:T(1,128)}', space=vmem, size = 0x12000, scoped, tag = 'internal scratch']
  #allocation2 [shape = 's32[1]{0}', space=sflag, size = 0x4, scoped, tag = 'scoped memory for tpu_custom_call.1']
  #allocation3 [shape = 'u8[512]{0}', space=smem, size = 0x200, scoped, tag = 'prefetched SMEM operand 0']
  %s0 = inlined_call_operand.vmem [shape: s32[3], index: 0, kind: input, shape index: {}]
  %s1 = inlined_call_operand.vmem [shape: bf16[192,1408], index: 1, kind: input, shape index: {}]
  %s2 = inlined_call_operand.vmem [shape: f32[192,1], index: 2, kind: input, shape index: {}]
  %s3 = inlined_call_operand.vmem [shape: bf16[3,1408,64], index: 3, kind: input, shape index: {}]
  %s4 = inlined_call_operand.vmem [shape: f32[3,1,64], index: 4, kind: input, shape index: {}]
  %s5 = inlined_call_operand.vmem [shape: bf16[3,64,32], index: 5, kind: input, shape index: {}]
  %s6 = inlined_call_operand.vmem [shape: f32[3,1,32], index: 6, kind: input, shape index: {}]
  %s7 = inlined_call_operand.vmem [shape: bf16[3,32,16], index: 7, kind: input, shape index: {}]
  %s8 = inlined_call_operand.vmem [shape: f32[3,1,16], index: 8, kind: input, shape index: {}]
  %s9 = inlined_call_operand.vmem [shape: bf16[3,16,128], index: 9, kind: input, shape index: {}]
  %s10 = inlined_call_operand.vmem [shape: f32[3,1,128], index: 10, kind: input, shape index: {}]
  %s11 = inlined_call_operand.hbm [shape: f32[24,128], index: 11, kind: output, shape index: {}]
  %s12 = sld [smem:[#allocation0]]
  $region73: #{tpu_custom_call.1} parent=0
    _
  %s14 = ssub.s32 1, %s12
  %s15 = scalar_select 0, %s14, %s12
  %s16 = sshll.u32 %s0, 4
  %s17 = int_to_ptr.vmem [resolvable:$true] %s16
  %19 = dma.vmem_to_smem %s17, 16, [#allocation3], [#allocation2]
  %20 = dma.done [#allocation2], 16
  %21 = sfence
  $region1: #{tpu_custom_call.1} parent=0
    #allocation4 [shape = 'u8[8192]{0}', space=vmem, size = 0x2000, scoped, tag = 'output window, operand 0']
    #allocation5 [shape = 's32[2]{0}', space=sflag, size = 0x8, scoped, tag = 'scoped memory for tpu_custom_call.1']
    %22 = vsyncpa [#allocation5], 0
    %s23 = scalar_lea.sflag [#allocation5], 1
    %24 = vsyncpa %s23, 0
    loop: start=0, step=1, limit=5
    $region2: #{tpu_custom_call.1} parent=1 // loop_pre_header
      _
    $region3: #{tpu_custom_call.1} parent=1 // loop_header
      %s26 = sphi 0, %s30
      %p27 = scmp.ge.s32.totalorder %s26, 5
      %s36 = sphi 0, %s38
      %s39 = sphi 0, %s36
      %s40 = sphi 0, %s39
      %s56 = sphi 0, %s40
      %s62 = sphi 0, %s64
      %s65 = sphi 0, %s62
      %s66 = sphi 0, %s65
      %s82 = sphi 0, %s66
      %s90 = sphi 0, %s92
      %s93 = sphi 0, %s90
      %s94 = sphi 0, %s93
      %s110 = sphi 0, %s94
      %s118 = sphi 0, %s120
      %s121 = sphi 0, %s118
      %s122 = sphi 0, %s121
      %s138 = sphi 0, %s122
      %s146 = sphi 0, %s148
      %s149 = sphi 0, %s146
      %s150 = sphi 0, %s149
      %s166 = sphi 0, %s150
      %s174 = sphi 0, %s176
      %s177 = sphi 0, %s174
      %s178 = sphi 0, %s177
      %s194 = sphi 0, %s178
      %s202 = sphi 0, %s204
      %s205 = sphi 0, %s202
      %s206 = sphi 0, %s205
      %s222 = sphi 0, %s206
      %s230 = sphi 0, %s232
      %s233 = sphi 0, %s230
      %s234 = sphi 0, %s233
      %s250 = sphi 0, %s234
      %s258 = sphi 0, %s260
      %s261 = sphi 0, %s258
      %s262 = sphi 0, %s261
      %s278 = sphi 0, %s262
      %s286 = sphi 0, %s288
      %s289 = sphi 0, %s286
      %s290 = sphi 0, %s289
      %s306 = sphi 0, %s290
      %s312 = sphi 0, %s314
      %s315 = sphi 0, %s312
      %s316 = sphi 0, %s315
      %s332 = sphi 0, %s316
    $region4: #{tpu_custom_call.1} parent=1 // loop_header_branch
      %29 = sbr.rel (%p27) target = $region8
    $region5: #{tpu_custom_call.1} parent=1 // loop_body
      %s31 = ssub.s32 %s26, 1
      %s32 = ssub.s32 %s26, 2
      %s33 = sadd.s32 %s26, 1
      %s34 = ssub.s32 %s26, %s33
      %p35 = scmp.eq.s32.totalorder %s34, 0
      %s37 = sadd.s32 %s36, 1
      %s38 = scalar_select %p35, %s36, %s37
      %p41 = pneg %p35
      %p42 = scmp.eq.s32.totalorder %s26, 2
      %p43 = por %p41, %p42
      %p44 = scmp.ne.s32.totalorder %s36, %s39
      %p45 = scmp.eq.s32.totalorder %s26, 0
      %p46 = por %p44, %p45
      %p47 = scmp.ne.s32.totalorder %s36, %s39
      %p48 = scmp.eq.s32.totalorder %s31, 2
      %p49 = por %p47, %p48
      %p50 = scmp.ne.s32.totalorder %s39, %s40
      %p51 = scmp.eq.s32.totalorder %s31, 0
      %p52 = por %p50, %p51
      %p53 = scmp.ne.s32.totalorder %s39, %s40
      %p54 = scmp.eq.s32.totalorder %s32, 2
      %p55 = por %p53, %p54
      %p57 = scmp.ne.s32.totalorder %s40, %s56
      %p58 = scmp.eq.s32.totalorder %s32, 0
      %p59 = por %p57, %p58
      %s60 = ssub.s32 %s26, %s33
      %p61 = scmp.eq.s32.totalorder %s60, 0
      %s63 = sadd.s32 %s62, 1
      %s64 = scalar_select %p61, %s62, %s63
      %p67 = pneg %p61
      %p68 = scmp.eq.s32.totalorder %s26, 2
      %p69 = por %p67, %p68
      %p70 = scmp.ne.s32.totalorder %s62, %s65
      %p71 = scmp.eq.s32.totalorder %s26, 0
      %p72 = por %p70, %p71
      %p73 = scmp.ne.s32.totalorder %s62, %s65
      %p74 = scmp.eq.s32.totalorder %s31, 2
      %p75 = por %p73, %p74
      %p76 = scmp.ne.s32.totalorder %s65, %s66
      %p77 = scmp.eq.s32.totalorder %s31, 0
      %p78 = por %p76, %p77
      %p79 = scmp.ne.s32.totalorder %s65, %s66
      %p80 = scmp.eq.s32.totalorder %s32, 2
      %p81 = por %p79, %p80
      %p83 = scmp.ne.s32.totalorder %s66, %s82
      %p84 = scmp.eq.s32.totalorder %s32, 0
      %p85 = por %p83, %p84
      %s86 = sld [smem:[#allocation3 + %s26]]
      %s87 = sld [smem:[#allocation3 + %s33]]
      %s88 = ssub.s32 %s86, %s87
      %p89 = scmp.eq.s32.totalorder %s88, 0
      %s91 = sadd.s32 %s90, 1
      %s92 = scalar_select %p89, %s90, %s91
      %p95 = pneg %p89
      %p96 = scmp.eq.s32.totalorder %s26, 2
      %p97 = por %p95, %p96
      %p98 = scmp.ne.s32.totalorder %s90, %s93
      %p99 = scmp.eq.s32.totalorder %s26, 0
      %p100 = por %p98, %p99
      %p101 = scmp.ne.s32.totalorder %s90, %s93
      %p102 = scmp.eq.s32.totalorder %s31, 2
      %p103 = por %p101, %p102
      %p104 = scmp.ne.s32.totalorder %s93, %s94
      %p105 = scmp.eq.s32.totalorder %s31, 0
      %p106 = por %p104, %p105
      %p107 = scmp.ne.s32.totalorder %s93, %s94
      %p108 = scmp.eq.s32.totalorder %s32, 2
      %p109 = por %p107, %p108
      %p111 = scmp.ne.s32.totalorder %s94, %s110
      %p112 = scmp.eq.s32.totalorder %s32, 0
      %p113 = por %p111, %p112
      %s114 = sld [smem:[#allocation3 + %s26]]
      %s115 = sld [smem:[#allocation3 + %s33]]
      %s116 = ssub.s32 %s114, %s115
      %p117 = scmp.eq.s32.totalorder %s116, 0
      %s119 = sadd.s32 %s118, 1
      %s120 = scalar_select %p117, %s118, %s119
      %p123 = pneg %p117
      %p124 = scmp.eq.s32.totalorder %s26, 2
      %p125 = por %p123, %p124
      %p126 = scmp.ne.s32.totalorder %s118, %s121
      %p127 = scmp.eq.s32.totalorder %s26, 0
      %p128 = por %p126, %p127
      %p129 = scmp.ne.s32.totalorder %s118, %s121
      %p130 = scmp.eq.s32.totalorder %s31, 2
      %p131 = por %p129, %p130
      %p132 = scmp.ne.s32.totalorder %s121, %s122
      %p133 = scmp.eq.s32.totalorder %s31, 0
      %p134 = por %p132, %p133
      %p135 = scmp.ne.s32.totalorder %s121, %s122
      %p136 = scmp.eq.s32.totalorder %s32, 2
      %p137 = por %p135, %p136
      %p139 = scmp.ne.s32.totalorder %s122, %s138
      %p140 = scmp.eq.s32.totalorder %s32, 0
      %p141 = por %p139, %p140
      %s142 = sld [smem:[#allocation3 + %s26]]
      %s143 = sld [smem:[#allocation3 + %s33]]
      %s144 = ssub.s32 %s142, %s143
      %p145 = scmp.eq.s32.totalorder %s144, 0
      %s147 = sadd.s32 %s146, 1
      %s148 = scalar_select %p145, %s146, %s147
      %p151 = pneg %p145
      %p152 = scmp.eq.s32.totalorder %s26, 2
      %p153 = por %p151, %p152
      %p154 = scmp.ne.s32.totalorder %s146, %s149
      %p155 = scmp.eq.s32.totalorder %s26, 0
      %p156 = por %p154, %p155
      %p157 = scmp.ne.s32.totalorder %s146, %s149
      %p158 = scmp.eq.s32.totalorder %s31, 2
      %p159 = por %p157, %p158
      %p160 = scmp.ne.s32.totalorder %s149, %s150
      %p161 = scmp.eq.s32.totalorder %s31, 0
      %p162 = por %p160, %p161
      %p163 = scmp.ne.s32.totalorder %s149, %s150
      %p164 = scmp.eq.s32.totalorder %s32, 2
      %p165 = por %p163, %p164
      %p167 = scmp.ne.s32.totalorder %s150, %s166
      %p168 = scmp.eq.s32.totalorder %s32, 0
      %p169 = por %p167, %p168
      %s170 = sld [smem:[#allocation3 + %s26]]
      %s171 = sld [smem:[#allocation3 + %s33]]
      %s172 = ssub.s32 %s170, %s171
      %p173 = scmp.eq.s32.totalorder %s172, 0
      %s175 = sadd.s32 %s174, 1
      %s176 = scalar_select %p173, %s174, %s175
      %p179 = pneg %p173
      %p180 = scmp.eq.s32.totalorder %s26, 2
      %p181 = por %p179, %p180
      %p182 = scmp.ne.s32.totalorder %s174, %s177
      %p183 = scmp.eq.s32.totalorder %s26, 0
      %p184 = por %p182, %p183
      %p185 = scmp.ne.s32.totalorder %s174, %s177
      %p186 = scmp.eq.s32.totalorder %s31, 2
      %p187 = por %p185, %p186
      %p188 = scmp.ne.s32.totalorder %s177, %s178
      %p189 = scmp.eq.s32.totalorder %s31, 0
      %p190 = por %p188, %p189
      %p191 = scmp.ne.s32.totalorder %s177, %s178
      %p192 = scmp.eq.s32.totalorder %s32, 2
      %p193 = por %p191, %p192
      %p195 = scmp.ne.s32.totalorder %s178, %s194
      %p196 = scmp.eq.s32.totalorder %s32, 0
      %p197 = por %p195, %p196
      %s198 = sld [smem:[#allocation3 + %s26]]
      %s199 = sld [smem:[#allocation3 + %s33]]
      %s200 = ssub.s32 %s198, %s199
      %p201 = scmp.eq.s32.totalorder %s200, 0
      %s203 = sadd.s32 %s202, 1
      %s204 = scalar_select %p201, %s202, %s203
      %p207 = pneg %p201
      %p208 = scmp.eq.s32.totalorder %s26, 2
      %p209 = por %p207, %p208
      %p210 = scmp.ne.s32.totalorder %s202, %s205
      %p211 = scmp.eq.s32.totalorder %s26, 0
      %p212 = por %p210, %p211
      %p213 = scmp.ne.s32.totalorder %s202, %s205
      %p214 = scmp.eq.s32.totalorder %s31, 2
      %p215 = por %p213, %p214
      %p216 = scmp.ne.s32.totalorder %s205, %s206
      %p217 = scmp.eq.s32.totalorder %s31, 0
      %p218 = por %p216, %p217
      %p219 = scmp.ne.s32.totalorder %s205, %s206
      %p220 = scmp.eq.s32.totalorder %s32, 2
      %p221 = por %p219, %p220
      %p223 = scmp.ne.s32.totalorder %s206, %s222
      %p224 = scmp.eq.s32.totalorder %s32, 0
      %p225 = por %p223, %p224
      %s226 = sld [smem:[#allocation3 + %s26]]
      %s227 = sld [smem:[#allocation3 + %s33]]
      %s228 = ssub.s32 %s226, %s227
      %p229 = scmp.eq.s32.totalorder %s228, 0
      %s231 = sadd.s32 %s230, 1
      %s232 = scalar_select %p229, %s230, %s231
      %p235 = pneg %p229
      %p236 = scmp.eq.s32.totalorder %s26, 2
      %p237 = por %p235, %p236
      %p238 = scmp.ne.s32.totalorder %s230, %s233
      %p239 = scmp.eq.s32.totalorder %s26, 0
      %p240 = por %p238, %p239
      %p241 = scmp.ne.s32.totalorder %s230, %s233
      %p242 = scmp.eq.s32.totalorder %s31, 2
      %p243 = por %p241, %p242
      %p244 = scmp.ne.s32.totalorder %s233, %s234
      %p245 = scmp.eq.s32.totalorder %s31, 0
      %p246 = por %p244, %p245
      %p247 = scmp.ne.s32.totalorder %s233, %s234
      %p248 = scmp.eq.s32.totalorder %s32, 2
      %p249 = por %p247, %p248
      %p251 = scmp.ne.s32.totalorder %s234, %s250
      %p252 = scmp.eq.s32.totalorder %s32, 0
      %p253 = por %p251, %p252
      %s254 = sld [smem:[#allocation3 + %s26]]
      %s255 = sld [smem:[#allocation3 + %s33]]
      %s256 = ssub.s32 %s254, %s255
      %p257 = scmp.eq.s32.totalorder %s256, 0
      %s259 = sadd.s32 %s258, 1
      %s260 = scalar_select %p257, %s258, %s259
      %p263 = pneg %p257
      %p264 = scmp.eq.s32.totalorder %s26, 2
      %p265 = por %p263, %p264
      %p266 = scmp.ne.s32.totalorder %s258, %s261
      %p267 = scmp.eq.s32.totalorder %s26, 0
      %p268 = por %p266, %p267
      %p269 = scmp.ne.s32.totalorder %s258, %s261
      %p270 = scmp.eq.s32.totalorder %s31, 2
      %p271 = por %p269, %p270
      %p272 = scmp.ne.s32.totalorder %s261, %s262
      %p273 = scmp.eq.s32.totalorder %s31, 0
      %p274 = por %p272, %p273
      %p275 = scmp.ne.s32.totalorder %s261, %s262
      %p276 = scmp.eq.s32.totalorder %s32, 2
      %p277 = por %p275, %p276
      %p279 = scmp.ne.s32.totalorder %s262, %s278
      %p280 = scmp.eq.s32.totalorder %s32, 0
      %p281 = por %p279, %p280
      %s282 = sld [smem:[#allocation3 + %s26]]
      %s283 = sld [smem:[#allocation3 + %s33]]
      %s284 = ssub.s32 %s282, %s283
      %p285 = scmp.eq.s32.totalorder %s284, 0
      %s287 = sadd.s32 %s286, 1
      %s288 = scalar_select %p285, %s286, %s287
      %p291 = pneg %p285
      %p292 = scmp.eq.s32.totalorder %s26, 2
      %p293 = por %p291, %p292
      %p294 = scmp.ne.s32.totalorder %s286, %s289
      %p295 = scmp.eq.s32.totalorder %s26, 0
      %p296 = por %p294, %p295
      %p297 = scmp.ne.s32.totalorder %s286, %s289
      %p298 = scmp.eq.s32.totalorder %s31, 2
      %p299 = por %p297, %p298
      %p300 = scmp.ne.s32.totalorder %s289, %s290
      %p301 = scmp.eq.s32.totalorder %s31, 0
      %p302 = por %p300, %p301
      %p303 = scmp.ne.s32.totalorder %s289, %s290
      %p304 = scmp.eq.s32.totalorder %s32, 2
      %p305 = por %p303, %p304
      %p307 = scmp.ne.s32.totalorder %s290, %s306
      %p308 = scmp.eq.s32.totalorder %s32, 0
      %p309 = por %p307, %p308
      %s310 = ssub.s32 %s26, %s33
      %p311 = scmp.eq.s32.totalorder %s310, 0
      %s313 = sadd.s32 %s312, 1
      %s314 = scalar_select %p311, %s312, %s313
      %p317 = pneg %p311
      %p318 = scmp.eq.s32.totalorder %s26, 2
      %p319 = por %p317, %p318
      %p320 = scmp.ne.s32.totalorder %s312, %s315
      %p321 = scmp.eq.s32.totalorder %s26, 0
      %p322 = por %p320, %p321
      %p323 = scmp.ne.s32.totalorder %s312, %s315
      %p324 = scmp.eq.s32.totalorder %s31, 2
      %p325 = por %p323, %p324
      %p326 = scmp.ne.s32.totalorder %s315, %s316
      %p327 = scmp.eq.s32.totalorder %s31, 0
      %p328 = por %p326, %p327
      %p329 = scmp.ne.s32.totalorder %s315, %s316
      %p330 = scmp.eq.s32.totalorder %s32, 2
      %p331 = por %p329, %p330
      %p333 = scmp.ne.s32.totalorder %s316, %s332
      %p334 = scmp.eq.s32.totalorder %s32, 0
      %p335 = por %p333, %p334
      %p336 = scmp.le.s32.totalorder 1, %s26
      %p337 = scmp.lt.s32.totalorder %s26, 4
      %p338 = pnand %p336, %p337
      %p339 = pneg %p338
      // Predicated region
      $region9: #{tpu_custom_call.1} parent=5 // pred_check
        _
      $region10: #{tpu_custom_call.1} parent=5 // pred_check_branch
        %341 = sbr.rel (%p338) target = $region12
      $region11: #{tpu_custom_call.1} parent=5 // pred_region
        %s342 = ssub.s32 %s26, 1
      $region12: #{tpu_custom_call.1} parent=5 // pred_fallthru
        _
      %p343 = scmp.lt.s32.totalorder %s26, 3
      // Predicated region
      $region13: #{tpu_custom_call.1} parent=5 // pred_check
        %p344 = pneg %p343
      $region14: #{tpu_custom_call.1} parent=5 // pred_check_branch
        %346 = sbr.rel (%p344) target = $region16
      $region15: #{tpu_custom_call.1} parent=5 // pred_region
        // Predicated region
        $region17: #{tpu_custom_call.1} parent=15 // pred_check
          %p347 = pneg %p46
        $region18: #{tpu_custom_call.1} parent=15 // pred_check_branch
          %349 = sbr.rel (%p347) target = $region20
        $region19: #{tpu_custom_call.1} parent=15 // pred_region
          %s350 = smul.u32 8, %s26
          %p351 = scmp.lt.s32.totalorder %s350, 23
          %s352 = scalar_select %p351, %s350, 23
          %s353 = smul.addr %s352, 11
          %s354 = smul.addr %s353, 4
          %s355 = scalar_lea.vmem %s1, %s354
          %s356 = smul.u32 8, %s26
        $region20: #{tpu_custom_call.1} parent=15 // pred_fallthru
          _
        // Predicated region
        $region21: #{tpu_custom_call.1} parent=15 // pred_check
          %p357 = pneg %p72
        $region22: #{tpu_custom_call.1} parent=15 // pred_check_branch
          %359 = sbr.rel (%p357) target = $region24
        $region23: #{tpu_custom_call.1} parent=15 // pred_region
          %s360 = smul.u32 8, %s26
          %p361 = scmp.lt.s32.totalorder %s360, 23
          %s362 = scalar_select %p361, %s360, 23
          %s363 = smul.addr %s362, 8
          %s364 = scalar_lea.vmem %s2, %s363
          %s365 = smul.u32 8, %s26
        $region24: #{tpu_custom_call.1} parent=15 // pred_fallthru
          _
        // Predicated region
        $region25: #{tpu_custom_call.1} parent=15 // pred_check
          %p366 = pneg %p100
        $region26: #{tpu_custom_call.1} parent=15 // pred_check_branch
          %368 = sbr.rel (%p366) target = $region28
        $region27: #{tpu_custom_call.1} parent=15 // pred_region
          %s369 = sld [smem:[#allocation3 + %s26]]
          %p370 = scmp.lt.s32.totalorder %s369, 2
          %s371 = scalar_select %p370, %s369, 2
          %s372 = smul.addr %s371, 176
          %s373 = smul.addr %s372, 4
          %s374 = scalar_lea.vmem %s3, %s373
          %s375 = sld [smem:[#allocation3 + %s26]]
        $region28: #{tpu_custom_call.1} parent=15 // pred_fallthru
          _
        // Predicated region
        $region29: #{tpu_custom_call.1} parent=15 // pred_check
          %p376 = pneg %p128
        $region30: #{tpu_custom_call.1} parent=15 // pred_check_branch
          %378 = sbr.rel (%p376) target = $region32
        $region31: #{tpu_custom_call.1} parent=15 // pred_region
          %s379 = sld [smem:[#allocation3 + %s26]]
          %p380 = scmp.lt.s32.totalorder %s379, 2
          %s381 = scalar_select %p380, %s379, 2
          %s382 = scalar_lea.vmem %s4, %s381
          %s383 = sld [smem:[#allocation3 + %s26]]
        $region32: #{tpu_custom_call.1} parent=15 // pred_fallthru
          _
        // Predicated region
        $region33: #{tpu_custom_call.1} parent=15 // pred_check
          %p384 = pneg %p156
        $region34: #{tpu_custom_call.1} parent=15 // pred_check_branch
          %386 = sbr.rel (%p384) target = $region36
        $region35: #{tpu_custom_call.1} parent=15 // pred_region
          %s387 = sld [smem:[#allocation3 + %s26]]
          %p388 = scmp.lt.s32.totalorder %s387, 2
          %s389 = scalar_select %p388, %s387, 2
          %s390 = smul.addr %s389, 8
          %s391 = smul.addr %s390, 4
          %s392 = scalar_lea.vmem %s5, %s391
          %s393 = sld [smem:[#allocation3 + %s26]]
        $region36: #{tpu_custom_call.1} parent=15 // pred_fallthru
          _
        // Predicated region
        $region37: #{tpu_custom_call.1} parent=15 // pred_check
          %p394 = pneg %p184
        $region38: #{tpu_custom_call.1} parent=15 // pred_check_branch
          %396 = sbr.rel (%p394) target = $region40
        $region39: #{tpu_custom_call.1} parent=15 // pred_region
          %s397 = sld [smem:[#allocation3 + %s26]]
          %p398 = scmp.lt.s32.totalorder %s397, 2
          %s399 = scalar_select %p398, %s397, 2
          %s400 = scalar_lea.vmem %s6, %s399
          %s401 = sld [smem:[#allocation3 + %s26]]
        $region40: #{tpu_custom_call.1} parent=15 // pred_fallthru
          _
        // Predicated region
        $region41: #{tpu_custom_call.1} parent=15 // pred_check
          %p402 = pneg %p212
        $region42: #{tpu_custom_call.1} parent=15 // pred_check_branch
          %404 = sbr.rel (%p402) target = $region44
        $region43: #{tpu_custom_call.1} parent=15 // pred_region
          %s405 = sld [smem:[#allocation3 + %s26]]
          %p406 = scmp.lt.s32.totalorder %s405, 2
          %s407 = scalar_select %p406, %s405, 2
          %s408 = smul.addr %s407, 4
          %s409 = smul.addr %s408, 4
          %s410 = scalar_lea.vmem %s7, %s409
          %s411 = sld [smem:[#allocation3 + %s26]]
        $region44: #{tpu_custom_call.1} parent=15 // pred_fallthru
          _
        // Predicated region
        $region45: #{tpu_custom_call.1} parent=15 // pred_check
          %p412 = pneg %p240
        $region46: #{tpu_custom_call.1} parent=15 // pred_check_branch
          %414 = sbr.rel (%p412) target = $region48
        $region47: #{tpu_custom_call.1} parent=15 // pred_region
          %s415 = sld [smem:[#allocation3 + %s26]]
          %p416 = scmp.lt.s32.totalorder %s415, 2
          %s417 = scalar_select %p416, %s415, 2
          %s418 = scalar_lea.vmem %s8, %s417
          %s419 = sld [smem:[#allocation3 + %s26]]
        $region48: #{tpu_custom_call.1} parent=15 // pred_fallthru
          _
        // Predicated region
        $region49: #{tpu_custom_call.1} parent=15 // pred_check
          %p420 = pneg %p268
        $region50: #{tpu_custom_call.1} parent=15 // pred_check_branch
          %422 = sbr.rel (%p420) target = $region52
        $region51: #{tpu_custom_call.1} parent=15 // pred_region
          %s423 = sld [smem:[#allocation3 + %s26]]
          %p424 = scmp.lt.s32.totalorder %s423, 2
          %s425 = scalar_select %p424, %s423, 2
          %s426 = smul.addr %s425, 2
          %s427 = smul.addr %s426, 4
          %s428 = scalar_lea.vmem %s9, %s427
          %s429 = sld [smem:[#allocation3 + %s26]]
        $region52: #{tpu_custom_call.1} parent=15 // pred_fallthru
          _
        // Predicated region
        $region53: #{tpu_custom_call.1} parent=15 // pred_check
          %p430 = pneg %p296
        $region54: #{tpu_custom_call.1} parent=15 // pred_check_branch
          %432 = sbr.rel (%p430) target = $region56
        $region55: #{tpu_custom_call.1} parent=15 // pred_region
          %s433 = sld [smem:[#allocation3 + %s26]]
          %p434 = scmp.lt.s32.totalorder %s433, 2
          %s435 = scalar_select %p434, %s433, 2
          %s436 = scalar_lea.vmem %s10, %s435
          %s437 = sld [smem:[#allocation3 + %s26]]
        $region56: #{tpu_custom_call.1} parent=15 // pred_fallthru
          _
      $region16: #{tpu_custom_call.1} parent=5 // pred_fallthru
        _
      %p438 = scmp.le.s32.totalorder 1, %s26
      %p439 = scmp.lt.s32.totalorder %s26, 4
      %p440 = pnand %p438, %p439
      %p441 = pneg %p440
      // Predicated region
      $region57: #{tpu_custom_call.1} parent=5 // pred_check
        _
      $region58: #{tpu_custom_call.1} parent=5 // pred_check_branch
        %443 = sbr.rel (%p440) target = $region60
      $region59: #{tpu_custom_call.1} parent=5 // pred_region
        %s444 = ssub.s32 %s26, 1
        %s445 = smul.u32 8, %s31
        %p446 = scmp.lt.s32.totalorder %s445, 23
        %s447 = scalar_select %p446, %s445, 23
        %s448 = smul.addr %s447, 11
        %s449 = smul.addr %s448, 4
        %s450 = scalar_lea.vmem %s1, %s449
        %p451 = pneg %p52
        %p452 = pneg %p49
        %s453 = smul.u32 8, %s31
        %p454 = scmp.lt.s32.totalorder %s453, 23
        %s455 = scalar_select %p454, %s453, 23
        %s456 = smul.addr %s455, 8
        %s457 = scalar_lea.vmem %s2, %s456
        %p458 = pneg %p78
        %p459 = pneg %p75
        %s460 = sld [smem:[#allocation3 + %s31]]
        %p461 = scmp.lt.s32.totalorder %s460, 2
        %s462 = scalar_select %p461, %s460, 2
        %s463 = smul.addr %s462, 176
        %s464 = smul.addr %s463, 4
        %s465 = scalar_lea.vmem %s3, %s464
        %p466 = pneg %p106
        %p467 = pneg %p103
        %s468 = sld [smem:[#allocation3 + %s31]]
        %p469 = scmp.lt.s32.totalorder %s468, 2
        %s470 = scalar_select %p469, %s468, 2
        %s471 = scalar_lea.vmem %s4, %s470
        %p472 = pneg %p134
        %p473 = pneg %p131
        %s474 = sld [smem:[#allocation3 + %s31]]
        %p475 = scmp.lt.s32.totalorder %s474, 2
        %s476 = scalar_select %p475, %s474, 2
        %s477 = smul.addr %s476, 8
        %s478 = smul.addr %s477, 4
        %s479 = scalar_lea.vmem %s5, %s478
        %p480 = pneg %p162
        %p481 = pneg %p159
        %s482 = sld [smem:[#allocation3 + %s31]]
        %p483 = scmp.lt.s32.totalorder %s482, 2
        %s484 = scalar_select %p483, %s482, 2
        %s485 = scalar_lea.vmem %s6, %s484
        %p486 = pneg %p190
        %p487 = pneg %p187
        %s488 = sld [smem:[#allocation3 + %s31]]
        %p489 = scmp.lt.s32.totalorder %s488, 2
        %s490 = scalar_select %p489, %s488, 2
        %s491 = smul.addr %s490, 4
        %s492 = smul.addr %s491, 4
        %s493 = scalar_lea.vmem %s7, %s492
        %p494 = pneg %p218
        %p495 = pneg %p215
        %s496 = sld [smem:[#allocation3 + %s31]]
        %p497 = scmp.lt.s32.totalorder %s496, 2
        %s498 = scalar_select %p497, %s496, 2
        %s499 = scalar_lea.vmem %s8, %s498
        %p500 = pneg %p246
        %p501 = pneg %p243
        %s502 = sld [smem:[#allocation3 + %s31]]
        %p503 = scmp.lt.s32.totalorder %s502, 2
        %s504 = scalar_select %p503, %s502, 2
        %s505 = smul.addr %s504, 2
        %s506 = smul.addr %s505, 4
        %s507 = scalar_lea.vmem %s9, %s506
        %p508 = pneg %p274
        %p509 = pneg %p271
        %s510 = sld [smem:[#allocation3 + %s31]]
        %p511 = scmp.lt.s32.totalorder %s510, 2
        %s512 = scalar_select %p511, %s510, 2
        %s513 = scalar_lea.vmem %s10, %s512
        %p514 = pneg %p302
        %p515 = pneg %p299
        %p516 = pneg %p328
        %p517 = pneg %p325
        %s518 = sand.u32 %s315, 1
        %s519 = scalar_lea.sflag [#allocation5], %s518
        %s520 = sand.u32 %s315, 1
        %s521 = smul.addr %s520, 8
        %s522 = scalar_lea.vmem [#allocation4], %s521
        %s523 = smul.u32 8, %s31
        %p524 = scmp.lt.s32.totalorder %s523, 23
        %s525 = scalar_select %p524, %s523, 23
        %s526 = smul.addr %s525, 11
        %s527 = smul.addr %s526, 4
        %s528 = scalar_lea.vmem %s1, %s527
        %s529 = smul.u32 8, %s31
        %s530 = smul.u32 8, %s31
        %p531 = scmp.lt.s32.totalorder %s530, 23
        %s532 = scalar_select %p531, %s530, 23
        %s533 = smul.addr %s532, 8
        %s534 = scalar_lea.vmem %s2, %s533
        %s535 = smul.u32 8, %s31
        %s536 = sld [smem:[#allocation3 + %s31]]
        %p537 = scmp.lt.s32.totalorder %s536, 2
        %s538 = scalar_select %p537, %s536, 2
        %s539 = smul.addr %s538, 176
        %s540 = smul.addr %s539, 4
        %s541 = scalar_lea.vmem %s3, %s540
        %s542 = sld [smem:[#allocation3 + %s31]]
        %s543 = sld [smem:[#allocation3 + %s31]]
        %p544 = scmp.lt.s32.totalorder %s543, 2
        %s545 = scalar_select %p544, %s543, 2
        %s546 = scalar_lea.vmem %s4, %s545
        %s547 = sld [smem:[#allocation3 + %s31]]
        %s548 = sld [smem:[#allocation3 + %s31]]
        %p549 = scmp.lt.s32.totalorder %s548, 2
        %s550 = scalar_select %p549, %s548, 2
        %s551 = smul.addr %s550, 8
        %s552 = smul.addr %s551, 4
        %s553 = scalar_lea.vmem %s5, %s552
        %s554 = sld [smem:[#allocation3 + %s31]]
        %s555 = sld [smem:[#allocation3 + %s31]]
        %p556 = scmp.lt.s32.totalorder %s555, 2
        %s557 = scalar_select %p556, %s555, 2
        %s558 = scalar_lea.vmem %s6, %s557
        %s559 = sld [smem:[#allocation3 + %s31]]
        %s560 = sld [smem:[#allocation3 + %s31]]
        %p561 = scmp.lt.s32.totalorder %s560, 2
        %s562 = scalar_select %p561, %s560, 2
        %s563 = smul.addr %s562, 4
        %s564 = smul.addr %s563, 4
        %s565 = scalar_lea.vmem %s7, %s564
        %s566 = sld [smem:[#allocation3 + %s31]]
        %s567 = sld [smem:[#allocation3 + %s31]]
        %p568 = scmp.lt.s32.totalorder %s567, 2
        %s569 = scalar_select %p568, %s567, 2
        %s570 = scalar_lea.vmem %s8, %s569
        %s571 = sld [smem:[#allocation3 + %s31]]
        %s572 = sld [smem:[#allocation3 + %s31]]
        %p573 = scmp.lt.s32.totalorder %s572, 2
        %s574 = scalar_select %p573, %s572, 2
        %s575 = smul.addr %s574, 2
        %s576 = smul.addr %s575, 4
        %s577 = scalar_lea.vmem %s9, %s576
        %s578 = sld [smem:[#allocation3 + %s31]]
        %s579 = sld [smem:[#allocation3 + %s31]]
        %p580 = scmp.lt.s32.totalorder %s579, 2
        %s581 = scalar_select %p580, %s579, 2
        %s582 = scalar_lea.vmem %s10, %s581
        %s583 = sld [smem:[#allocation3 + %s31]]
        %v585 = vld [vmem:[%s528] sm:$0xff]
        %v586 = vld [vmem:[%s528 + $0x8] sm:$0xff]
        %v587 = vld [vmem:[%s528 + $0x10] sm:$0xff]
        %v588 = vld [vmem:[%s528 + $0x18] sm:$0xff]
        %v589 = vld [vmem:[%s528 + $0x20] sm:$0xff]
        %v590 = vld [vmem:[%s528 + $0x28] sm:$0xf]
        %v591 = vld [vmem:[%s528 + $0x2c] sm:$0xff]
        %v592 = vld [vmem:[%s528 + $0x34] sm:$0xff]
        %v593 = vld [vmem:[%s528 + $0x3c] sm:$0xff]
        %v594 = vld [vmem:[%s528 + $0x44] sm:$0xff]
        %v595 = vld [vmem:[%s528 + $0x4c] sm:$0xff]
        %v596 = vld [vmem:[%s528 + $0x54] sm:$0xf]
        %v597 = vld [vmem:[%s528 + $0x58] sm:$0xff]
        %v598 = vld [vmem:[%s528 + $0x60] sm:$0xff]
        %v599 = vld [vmem:[%s528 + $0x68] sm:$0xff]
        %v600 = vld [vmem:[%s528 + $0x70] sm:$0xff]
        %v601 = vld [vmem:[%s528 + $0x78] sm:$0xff]
        %v602 = vld [vmem:[%s528 + $0x80] sm:$0xf]
        %v603 = vld [vmem:[%s528 + $0x84] sm:$0xff]
        %v604 = vld [vmem:[%s528 + $0x8c] sm:$0xff]
        %v605 = vld [vmem:[%s528 + $0x94] sm:$0xff]
        %v606 = vld [vmem:[%s528 + $0x9c] sm:$0xff]
        %v607 = vld [vmem:[%s528 + $0xa4] sm:$0xff]
        %v608 = vld [vmem:[%s528 + $0xac] sm:$0xf]
        %v609 = vld [vmem:[%s528 + $0xb0] sm:$0xff]
        %v610 = vld [vmem:[%s528 + $0xb8] sm:$0xff]
        %v611 = vld [vmem:[%s528 + $0xc0] sm:$0xff]
        %v612 = vld [vmem:[%s528 + $0xc8] sm:$0xff]
        %v613 = vld [vmem:[%s528 + $0xd0] sm:$0xff]
        %v614 = vld [vmem:[%s528 + $0xd8] sm:$0xf]
        %v615 = vld [vmem:[%s528 + $0xdc] sm:$0xff]
        %v616 = vld [vmem:[%s528 + $0xe4] sm:$0xff]
        %v617 = vld [vmem:[%s528 + $0xec] sm:$0xff]
        %v618 = vld [vmem:[%s528 + $0xf4] sm:$0xff]
        %v619 = vld [vmem:[%s528 + $0xfc] sm:$0xff]
        %v620 = vld [vmem:[%s528 + $0x104] sm:$0xf]
        %v621 = vld [vmem:[%s528 + $0x108] sm:$0xff]
        %v622 = vld [vmem:[%s528 + $0x110] sm:$0xff]
        %v623 = vld [vmem:[%s528 + $0x118] sm:$0xff]
        %v624 = vld [vmem:[%s528 + $0x120] sm:$0xff]
        %v625 = vld [vmem:[%s528 + $0x128] sm:$0xff]
        %v626 = vld [vmem:[%s528 + $0x130] sm:$0xf]
        %v627 = vld [vmem:[%s528 + $0x134] sm:$0xff]
        %v628 = vld [vmem:[%s528 + $0x13c] sm:$0xff]
        %v629 = vld [vmem:[%s528 + $0x144] sm:$0xff]
        %v630 = vld [vmem:[%s528 + $0x14c] sm:$0xff]
        %v631 = vld [vmem:[%s528 + $0x154] sm:$0xff]
        %v632 = vld [vmem:[%s528 + $0x15c] sm:$0xf]
        %v633 = vld [vmem:[%s541] sm:$0xf]
        %v634 = vld [vmem:[%s541 + $0x4] sm:$0xf]
        %v635 = vld [vmem:[%s541 + $0x8] sm:$0xf]
        %v636 = vld [vmem:[%s541 + $0xc] sm:$0xf]
        %v637 = vld [vmem:[%s541 + $0x10] sm:$0xf]
        %v638 = vld [vmem:[%s541 + $0x14] sm:$0xf]
        %v639 = vld [vmem:[%s541 + $0x18] sm:$0xf]
        %v640 = vld [vmem:[%s541 + $0x1c] sm:$0xf]
        %v641 = vld [vmem:[%s541 + $0x20] sm:$0xf]
        %v642 = vld [vmem:[%s541 + $0x24] sm:$0xf]
        %v643 = vld [vmem:[%s541 + $0x28] sm:$0xf]
        %v644 = vld [vmem:[%s541 + $0x2c] sm:$0xf]
        %v645 = vld [vmem:[%s541 + $0x30] sm:$0xf]
        %v646 = vld [vmem:[%s541 + $0x34] sm:$0xf]
        %v647 = vld [vmem:[%s541 + $0x38] sm:$0xf]
        %v648 = vld [vmem:[%s541 + $0x3c] sm:$0xf]
        %v649 = vld [vmem:[%s541 + $0x40] sm:$0xf]
        %v650 = vld [vmem:[%s541 + $0x44] sm:$0xf]
        %v651 = vld [vmem:[%s541 + $0x48] sm:$0xf]
        %v652 = vld [vmem:[%s541 + $0x4c] sm:$0xf]
        %v653 = vld [vmem:[%s541 + $0x50] sm:$0xf]
        %v654 = vld [vmem:[%s541 + $0x54] sm:$0xf]
        %v655 = vld [vmem:[%s541 + $0x58] sm:$0xf]
        %v656 = vld [vmem:[%s541 + $0x5c] sm:$0xf]
        %v657 = vld [vmem:[%s541 + $0x60] sm:$0xf]
        %v658 = vld [vmem:[%s541 + $0x64] sm:$0xf]
        %v659 = vld [vmem:[%s541 + $0x68] sm:$0xf]
        %v660 = vld [vmem:[%s541 + $0x6c] sm:$0xf]
        %v661 = vld [vmem:[%s541 + $0x70] sm:$0xf]
        %v662 = vld [vmem:[%s541 + $0x74] sm:$0xf]
        %v663 = vld [vmem:[%s541 + $0x78] sm:$0xf]
        %v664 = vld [vmem:[%s541 + $0x7c] sm:$0xf]
        %v665 = vld [vmem:[%s541 + $0x80] sm:$0xf]
        %v666 = vld [vmem:[%s541 + $0x84] sm:$0xf]
        %v667 = vld [vmem:[%s541 + $0x88] sm:$0xf]
        %v668 = vld [vmem:[%s541 + $0x8c] sm:$0xf]
        %v669 = vld [vmem:[%s541 + $0x90] sm:$0xf]
        %v670 = vld [vmem:[%s541 + $0x94] sm:$0xf]
        %v671 = vld [vmem:[%s541 + $0x98] sm:$0xf]
        %v672 = vld [vmem:[%s541 + $0x9c] sm:$0xf]
        %v673 = vld [vmem:[%s541 + $0xa0] sm:$0xf]
        %v674 = vld [vmem:[%s541 + $0xa4] sm:$0xf]
        %v675 = vld [vmem:[%s541 + $0xa8] sm:$0xf]
        %v676 = vld [vmem:[%s541 + $0xac] sm:$0xf]
        %v677 = vld [vmem:[%s541 + $0xb0] sm:$0xf]
        %v678 = vld [vmem:[%s541 + $0xb4] sm:$0xf]
        %v679 = vld [vmem:[%s541 + $0xb8] sm:$0xf]
        %v680 = vld [vmem:[%s541 + $0xbc] sm:$0xf]
        %v681 = vld [vmem:[%s541 + $0xc0] sm:$0xf]
        %v682 = vld [vmem:[%s541 + $0xc4] sm:$0xf]
        %v683 = vld [vmem:[%s541 + $0xc8] sm:$0xf]
        %v684 = vld [vmem:[%s541 + $0xcc] sm:$0xf]
        %v685 = vld [vmem:[%s541 + $0xd0] sm:$0xf]
        %v686 = vld [vmem:[%s541 + $0xd4] sm:$0xf]
        %v687 = vld [vmem:[%s541 + $0xd8] sm:$0xf]
        %v688 = vld [vmem:[%s541 + $0xdc] sm:$0xf]
        %v689 = vld [vmem:[%s541 + $0xe0] sm:$0xf]
        %v690 = vld [vmem:[%s541 + $0xe4] sm:$0xf]
        %v691 = vld [vmem:[%s541 + $0xe8] sm:$0xf]
        %v692 = vld [vmem:[%s541 + $0xec] sm:$0xf]
        %v693 = vld [vmem:[%s541 + $0xf0] sm:$0xf]
        %v694 = vld [vmem:[%s541 + $0xf4] sm:$0xf]
        %v695 = vld [vmem:[%s541 + $0xf8] sm:$0xf]
        %v696 = vld [vmem:[%s541 + $0xfc] sm:$0xf]
        %v697 = vld [vmem:[%s541 + $0x100] sm:$0xf]
        %v698 = vld [vmem:[%s541 + $0x104] sm:$0xf]
        %v699 = vld [vmem:[%s541 + $0x108] sm:$0xf]
        %v700 = vld [vmem:[%s541 + $0x10c] sm:$0xf]
        %v701 = vld [vmem:[%s541 + $0x110] sm:$0xf]
        %v702 = vld [vmem:[%s541 + $0x114] sm:$0xf]
        %v703 = vld [vmem:[%s541 + $0x118] sm:$0xf]
        %v704 = vld [vmem:[%s541 + $0x11c] sm:$0xf]
        %v705 = vld [vmem:[%s541 + $0x120] sm:$0xf]
        %v706 = vld [vmem:[%s541 + $0x124] sm:$0xf]
        %v707 = vld [vmem:[%s541 + $0x128] sm:$0xf]
        %v708 = vld [vmem:[%s541 + $0x12c] sm:$0xf]
        %v709 = vld [vmem:[%s541 + $0x130] sm:$0xf]
        %v710 = vld [vmem:[%s541 + $0x134] sm:$0xf]
        %v711 = vld [vmem:[%s541 + $0x138] sm:$0xf]
        %v712 = vld [vmem:[%s541 + $0x13c] sm:$0xf]
        %v713 = vld [vmem:[%s541 + $0x140] sm:$0xf]
        %v714 = vld [vmem:[%s541 + $0x144] sm:$0xf]
        %v715 = vld [vmem:[%s541 + $0x148] sm:$0xf]
        %v716 = vld [vmem:[%s541 + $0x14c] sm:$0xf]
        %v717 = vld [vmem:[%s541 + $0x150] sm:$0xf]
        %v718 = vld [vmem:[%s541 + $0x154] sm:$0xf]
        %v719 = vld [vmem:[%s541 + $0x158] sm:$0xf]
        %v720 = vld [vmem:[%s541 + $0x15c] sm:$0xf]
        %v721 = vld [vmem:[%s541 + $0x160] sm:$0xf]
        %v722 = vld [vmem:[%s541 + $0x164] sm:$0xf]
        %v723 = vld [vmem:[%s541 + $0x168] sm:$0xf]
        %v724 = vld [vmem:[%s541 + $0x16c] sm:$0xf]
        %v725 = vld [vmem:[%s541 + $0x170] sm:$0xf]
        %v726 = vld [vmem:[%s541 + $0x174] sm:$0xf]
        %v727 = vld [vmem:[%s541 + $0x178] sm:$0xf]
        %v728 = vld [vmem:[%s541 + $0x17c] sm:$0xf]
        %v729 = vld [vmem:[%s541 + $0x180] sm:$0xf]
        %v730 = vld [vmem:[%s541 + $0x184] sm:$0xf]
        %v731 = vld [vmem:[%s541 + $0x188] sm:$0xf]
        %v732 = vld [vmem:[%s541 + $0x18c] sm:$0xf]
        %v733 = vld [vmem:[%s541 + $0x190] sm:$0xf]
        %v734 = vld [vmem:[%s541 + $0x194] sm:$0xf]
        %v735 = vld [vmem:[%s541 + $0x198] sm:$0xf]
        %v736 = vld [vmem:[%s541 + $0x19c] sm:$0xf]
        %v737 = vld [vmem:[%s541 + $0x1a0] sm:$0xf]
        %v738 = vld [vmem:[%s541 + $0x1a4] sm:$0xf]
        %v739 = vld [vmem:[%s541 + $0x1a8] sm:$0xf]
        %v740 = vld [vmem:[%s541 + $0x1ac] sm:$0xf]
        %v741 = vld [vmem:[%s541 + $0x1b0] sm:$0xf]
        %v742 = vld [vmem:[%s541 + $0x1b4] sm:$0xf]
        %v743 = vld [vmem:[%s541 + $0x1b8] sm:$0xf]
        %v744 = vld [vmem:[%s541 + $0x1bc] sm:$0xf]
        %v745 = vld [vmem:[%s541 + $0x1c0] sm:$0xf]
        %v746 = vld [vmem:[%s541 + $0x1c4] sm:$0xf]
        %v747 = vld [vmem:[%s541 + $0x1c8] sm:$0xf]
        %v748 = vld [vmem:[%s541 + $0x1cc] sm:$0xf]
        %v749 = vld [vmem:[%s541 + $0x1d0] sm:$0xf]
        %v750 = vld [vmem:[%s541 + $0x1d4] sm:$0xf]
        %v751 = vld [vmem:[%s541 + $0x1d8] sm:$0xf]
        %v752 = vld [vmem:[%s541 + $0x1dc] sm:$0xf]
        %v753 = vld [vmem:[%s541 + $0x1e0] sm:$0xf]
        %v754 = vld [vmem:[%s541 + $0x1e4] sm:$0xf]
        %v755 = vld [vmem:[%s541 + $0x1e8] sm:$0xf]
        %v756 = vld [vmem:[%s541 + $0x1ec] sm:$0xf]
        %v757 = vld [vmem:[%s541 + $0x1f0] sm:$0xf]
        %v758 = vld [vmem:[%s541 + $0x1f4] sm:$0xf]
        %v759 = vld [vmem:[%s541 + $0x1f8] sm:$0xf]
        %v760 = vld [vmem:[%s541 + $0x1fc] sm:$0xf]
        %v761 = vld [vmem:[%s541 + $0x200] sm:$0xf]
        %v762 = vld [vmem:[%s541 + $0x204] sm:$0xf]
        %v763 = vld [vmem:[%s541 + $0x208] sm:$0xf]
        %v764 = vld [vmem:[%s541 + $0x20c] sm:$0xf]
        %v765 = vld [vmem:[%s541 + $0x210] sm:$0xf]
        %v766 = vld [vmem:[%s541 + $0x214] sm:$0xf]
        %v767 = vld [vmem:[%s541 + $0x218] sm:$0xf]
        %v768 = vld [vmem:[%s541 + $0x21c] sm:$0xf]
        %v769 = vld [vmem:[%s541 + $0x220] sm:$0xf]
        %v770 = vld [vmem:[%s541 + $0x224] sm:$0xf]
        %v771 = vld [vmem:[%s541 + $0x228] sm:$0xf]
        %v772 = vld [vmem:[%s541 + $0x22c] sm:$0xf]
        %v773 = vld [vmem:[%s541 + $0x230] sm:$0xf]
        %v774 = vld [vmem:[%s541 + $0x234] sm:$0xf]
        %v775 = vld [vmem:[%s541 + $0x238] sm:$0xf]
        %v776 = vld [vmem:[%s541 + $0x23c] sm:$0xf]
        %v777 = vld [vmem:[%s541 + $0x240] sm:$0xf]
        %v778 = vld [vmem:[%s541 + $0x244] sm:$0xf]
        %v779 = vld [vmem:[%s541 + $0x248] sm:$0xf]
        %v780 = vld [vmem:[%s541 + $0x24c] sm:$0xf]
        %v781 = vld [vmem:[%s541 + $0x250] sm:$0xf]
        %v782 = vld [vmem:[%s541 + $0x254] sm:$0xf]
        %v783 = vld [vmem:[%s541 + $0x258] sm:$0xf]
        %v784 = vld [vmem:[%s541 + $0x25c] sm:$0xf]
        %v785 = vld [vmem:[%s541 + $0x260] sm:$0xf]
        %v786 = vld [vmem:[%s541 + $0x264] sm:$0xf]
        %v787 = vld [vmem:[%s541 + $0x268] sm:$0xf]
        %v788 = vld [vmem:[%s541 + $0x26c] sm:$0xf]
        %v789 = vld [vmem:[%s541 + $0x270] sm:$0xf]
        %v790 = vld [vmem:[%s541 + $0x274] sm:$0xf]
        %v791 = vld [vmem:[%s541 + $0x278] sm:$0xf]
        %v792 = vld [vmem:[%s541 + $0x27c] sm:$0xf]
        %v793 = vld [vmem:[%s541 + $0x280] sm:$0xf]
        %v794 = vld [vmem:[%s541 + $0x284] sm:$0xf]
        %v795 = vld [vmem:[%s541 + $0x288] sm:$0xf]
        %v796 = vld [vmem:[%s541 + $0x28c] sm:$0xf]
        %v797 = vld [vmem:[%s541 + $0x290] sm:$0xf]
        %v798 = vld [vmem:[%s541 + $0x294] sm:$0xf]
        %v799 = vld [vmem:[%s541 + $0x298] sm:$0xf]
        %v800 = vld [vmem:[%s541 + $0x29c] sm:$0xf]
        %v801 = vld [vmem:[%s541 + $0x2a0] sm:$0xf]
        %v802 = vld [vmem:[%s541 + $0x2a4] sm:$0xf]
        %v803 = vld [vmem:[%s541 + $0x2a8] sm:$0xf]
        %v804 = vld [vmem:[%s541 + $0x2ac] sm:$0xf]
        %v805 = vld [vmem:[%s541 + $0x2b0] sm:$0xf]
        %v806 = vld [vmem:[%s541 + $0x2b4] sm:$0xf]
        %v807 = vld [vmem:[%s541 + $0x2b8] sm:$0xf]
        %v808 = vld [vmem:[%s541 + $0x2bc] sm:$0xf]
        %v809 = vld [vmem:[%s546] sm:$0x1]
        %v811 = vlaneseq
        %v812 = vshrl.u32 %v811, 7
        %v813 = vsub.s32 0, %v812
        %v814 = vrot.slane %v809, %v813
        %v864 = vunpack.c.l.b16 %v585
        %v865 = vunpack.c.h.b16 %v585
        %v866 = vunpack.c.l.b16 %v586
        %v867 = vunpack.c.h.b16 %v586
        %v868 = vunpack.c.l.b16 %v587
        %v869 = vunpack.c.h.b16 %v587
        %v870 = vunpack.c.l.b16 %v588
        %v871 = vunpack.c.h.b16 %v588
        %v872 = vunpack.c.l.b16 %v589
        %v873 = vunpack.c.h.b16 %v589
        %v874 = vunpack.c.l.b16 %v590
        %v875 = vunpack.c.l.b16 %v591
        %v876 = vunpack.c.h.b16 %v591
        %v877 = vunpack.c.l.b16 %v592
        %v878 = vunpack.c.h.b16 %v592
        %v879 = vunpack.c.l.b16 %v593
        %v880 = vunpack.c.h.b16 %v593
        %v881 = vunpack.c.l.b16 %v594
        %v882 = vunpack.c.h.b16 %v594
        %v883 = vunpack.c.l.b16 %v595
        %v884 = vunpack.c.h.b16 %v595
        %v885 = vunpack.c.l.b16 %v596
        %v886 = vunpack.c.l.b16 %v597
        %v887 = vunpack.c.h.b16 %v597
        %v888 = vunpack.c.l.b16 %v598
        %v889 = vunpack.c.h.b16 %v598
        %v890 = vunpack.c.l.b16 %v599
        %v891 = vunpack.c.h.b16 %v599
        %v892 = vunpack.c.l.b16 %v600
        %v893 = vunpack.c.h.b16 %v600
        %v894 = vunpack.c.l.b16 %v601
        %v895 = vunpack.c.h.b16 %v601
        %v896 = vunpack.c.l.b16 %v602
        %v897 = vunpack.c.l.b16 %v603
        %v898 = vunpack.c.h.b16 %v603
        %v899 = vunpack.c.l.b16 %v604
        %v900 = vunpack.c.h.b16 %v604
        %v901 = vunpack.c.l.b16 %v605
        %v902 = vunpack.c.h.b16 %v605
        %v903 = vunpack.c.l.b16 %v606
        %v904 = vunpack.c.h.b16 %v606
        %v905 = vunpack.c.l.b16 %v607
        %v906 = vunpack.c.h.b16 %v607
        %v907 = vunpack.c.l.b16 %v608
        %v908 = vunpack.c.l.b16 %v609
        %v909 = vunpack.c.h.b16 %v609
        %v910 = vunpack.c.l.b16 %v610
        %v911 = vunpack.c.h.b16 %v610
        %v912 = vunpack.c.l.b16 %v611
        %v913 = vunpack.c.h.b16 %v611
        %v914 = vunpack.c.l.b16 %v612
        %v915 = vunpack.c.h.b16 %v612
        %v916 = vunpack.c.l.b16 %v613
        %v917 = vunpack.c.h.b16 %v613
        %v918 = vunpack.c.l.b16 %v614
        %v919 = vunpack.c.l.b16 %v615
        %v920 = vunpack.c.h.b16 %v615
        %v921 = vunpack.c.l.b16 %v616
        %v922 = vunpack.c.h.b16 %v616
        %v923 = vunpack.c.l.b16 %v617
        %v924 = vunpack.c.h.b16 %v617
        %v925 = vunpack.c.l.b16 %v618
        %v926 = vunpack.c.h.b16 %v618
        %v927 = vunpack.c.l.b16 %v619
        %v928 = vunpack.c.h.b16 %v619
        %v929 = vunpack.c.l.b16 %v620
        %v930 = vunpack.c.l.b16 %v621
        %v931 = vunpack.c.h.b16 %v621
        %v932 = vunpack.c.l.b16 %v622
        %v933 = vunpack.c.h.b16 %v622
        %v934 = vunpack.c.l.b16 %v623
        %v935 = vunpack.c.h.b16 %v623
        %v936 = vunpack.c.l.b16 %v624
        %v937 = vunpack.c.h.b16 %v624
        %v938 = vunpack.c.l.b16 %v625
        %v939 = vunpack.c.h.b16 %v625
        %v940 = vunpack.c.l.b16 %v626
        %v941 = vunpack.c.l.b16 %v627
        %v942 = vunpack.c.h.b16 %v627
        %v943 = vunpack.c.l.b16 %v628
        %v944 = vunpack.c.h.b16 %v628
        %v945 = vunpack.c.l.b16 %v629
        %v946 = vunpack.c.h.b16 %v629
        %v947 = vunpack.c.l.b16 %v630
        %v948 = vunpack.c.h.b16 %v630
        %v949 = vunpack.c.l.b16 %v631
        %v950 = vunpack.c.h.b16 %v631
        %v951 = vunpack.c.l.b16 %v632
        %v952 = vpack.c.b16 %v875, %v864
        %v953 = vpack.c.b16 %v876, %v865
        %v954 = vpack.c.b16 %v877, %v866
        %v955 = vpack.c.b16 %v878, %v867
        %v956 = vpack.c.b16 %v879, %v868
        %v957 = vpack.c.b16 %v880, %v869
        %v958 = vpack.c.b16 %v881, %v870
        %v959 = vpack.c.b16 %v882, %v871
        %v960 = vpack.c.b16 %v883, %v872
        %v961 = vpack.c.b16 %v884, %v873
        %v962 = vpack.c.b16 %v885, %v874
        %v963 = vpack.c.b16 %v897, %v886
        %v964 = vpack.c.b16 %v898, %v887
        %v965 = vpack.c.b16 %v899, %v888
        %v966 = vpack.c.b16 %v900, %v889
        %v967 = vpack.c.b16 %v901, %v890
        %v968 = vpack.c.b16 %v902, %v891
        %v969 = vpack.c.b16 %v903, %v892
        %v970 = vpack.c.b16 %v904, %v893
        %v971 = vpack.c.b16 %v905, %v894
        %v972 = vpack.c.b16 %v906, %v895
        %v973 = vpack.c.b16 %v907, %v896
        %v974 = vpack.c.b16 %v919, %v908
        %v975 = vpack.c.b16 %v920, %v909
        %v976 = vpack.c.b16 %v921, %v910
        %v977 = vpack.c.b16 %v922, %v911
        %v978 = vpack.c.b16 %v923, %v912
        %v979 = vpack.c.b16 %v924, %v913
        %v980 = vpack.c.b16 %v925, %v914
        %v981 = vpack.c.b16 %v926, %v915
        %v982 = vpack.c.b16 %v927, %v916
        %v983 = vpack.c.b16 %v928, %v917
        %v984 = vpack.c.b16 %v929, %v918
        %v985 = vpack.c.b16 %v941, %v930
        %v986 = vpack.c.b16 %v942, %v931
        %v987 = vpack.c.b16 %v943, %v932
        %v988 = vpack.c.b16 %v944, %v933
        %v989 = vpack.c.b16 %v945, %v934
        %v990 = vpack.c.b16 %v946, %v935
        %v991 = vpack.c.b16 %v947, %v936
        %v992 = vpack.c.b16 %v948, %v937
        %v993 = vpack.c.b16 %v949, %v938
        %v994 = vpack.c.b16 %v950, %v939
        %v995 = vpack.c.b16 %v951, %v940
        %v1216 = vunpack.c.l.b16 %v633
        %v1217 = vunpack.c.l.b16 %v634
        %v1218 = vunpack.c.l.b16 %v635
        %v1219 = vunpack.c.l.b16 %v636
        %v1220 = vunpack.c.l.b16 %v637
        %v1221 = vunpack.c.l.b16 %v638
        %v1222 = vunpack.c.l.b16 %v639
        %v1223 = vunpack.c.l.b16 %v640
        %v1224 = vunpack.c.l.b16 %v641
        %v1225 = vunpack.c.l.b16 %v642
        %v1226 = vunpack.c.l.b16 %v643
        %v1227 = vunpack.c.l.b16 %v644
        %v1228 = vunpack.c.l.b16 %v645
        %v1229 = vunpack.c.l.b16 %v646
        %v1230 = vunpack.c.l.b16 %v647
        %v1231 = vunpack.c.l.b16 %v648
        %v1232 = vunpack.c.l.b16 %v649
        %v1233 = vunpack.c.l.b16 %v650
        %v1234 = vunpack.c.l.b16 %v651
        %v1235 = vunpack.c.l.b16 %v652
        %v1236 = vunpack.c.l.b16 %v653
        %v1237 = vunpack.c.l.b16 %v654
        %v1238 = vunpack.c.l.b16 %v655
        %v1239 = vunpack.c.l.b16 %v656
        %v1240 = vunpack.c.l.b16 %v657
        %v1241 = vunpack.c.l.b16 %v658
        %v1242 = vunpack.c.l.b16 %v659
        %v1243 = vunpack.c.l.b16 %v660
        %v1244 = vunpack.c.l.b16 %v661
        %v1245 = vunpack.c.l.b16 %v662
        %v1246 = vunpack.c.l.b16 %v663
        %v1247 = vunpack.c.l.b16 %v664
        %v1248 = vunpack.c.l.b16 %v665
        %v1249 = vunpack.c.l.b16 %v666
        %v1250 = vunpack.c.l.b16 %v667
        %v1251 = vunpack.c.l.b16 %v668
        %v1252 = vunpack.c.l.b16 %v669
        %v1253 = vunpack.c.l.b16 %v670
        %v1254 = vunpack.c.l.b16 %v671
        %v1255 = vunpack.c.l.b16 %v672
        %v1256 = vunpack.c.l.b16 %v673
        %v1257 = vunpack.c.l.b16 %v674
        %v1258 = vunpack.c.l.b16 %v675
        %v1259 = vunpack.c.l.b16 %v676
        %v1260 = vunpack.c.l.b16 %v677
        %v1261 = vunpack.c.l.b16 %v678
        %v1262 = vunpack.c.l.b16 %v679
        %v1263 = vunpack.c.l.b16 %v680
        %v1264 = vunpack.c.l.b16 %v681
        %v1265 = vunpack.c.l.b16 %v682
        %v1266 = vunpack.c.l.b16 %v683
        %v1267 = vunpack.c.l.b16 %v684
        %v1268 = vunpack.c.l.b16 %v685
        %v1269 = vunpack.c.l.b16 %v686
        %v1270 = vunpack.c.l.b16 %v687
        %v1271 = vunpack.c.l.b16 %v688
        %v1272 = vunpack.c.l.b16 %v689
        %v1273 = vunpack.c.l.b16 %v690
        %v1274 = vunpack.c.l.b16 %v691
        %v1275 = vunpack.c.l.b16 %v692
        %v1276 = vunpack.c.l.b16 %v693
        %v1277 = vunpack.c.l.b16 %v694
        %v1278 = vunpack.c.l.b16 %v695
        %v1279 = vunpack.c.l.b16 %v696
        %v1280 = vunpack.c.l.b16 %v697
        %v1281 = vunpack.c.l.b16 %v698
        %v1282 = vunpack.c.l.b16 %v699
        %v1283 = vunpack.c.l.b16 %v700
        %v1284 = vunpack.c.l.b16 %v701
        %v1285 = vunpack.c.l.b16 %v702
        %v1286 = vunpack.c.l.b16 %v703
        %v1287 = vunpack.c.l.b16 %v704
        %v1288 = vunpack.c.l.b16 %v705
        %v1289 = vunpack.c.l.b16 %v706
        %v1290 = vunpack.c.l.b16 %v707
        %v1291 = vunpack.c.l.b16 %v708
        %v1292 = vunpack.c.l.b16 %v709
        %v1293 = vunpack.c.l.b16 %v710
        %v1294 = vunpack.c.l.b16 %v711
        %v1295 = vunpack.c.l.b16 %v712
        %v1296 = vunpack.c.l.b16 %v713
        %v1297 = vunpack.c.l.b16 %v714
        %v1298 = vunpack.c.l.b16 %v715
        %v1299 = vunpack.c.l.b16 %v716
        %v1300 = vunpack.c.l.b16 %v717
        %v1301 = vunpack.c.l.b16 %v718
        %v1302 = vunpack.c.l.b16 %v719
        %v1303 = vunpack.c.l.b16 %v720
        %v1304 = vunpack.c.l.b16 %v721
        %v1305 = vunpack.c.l.b16 %v722
        %v1306 = vunpack.c.l.b16 %v723
        %v1307 = vunpack.c.l.b16 %v724
        %v1308 = vunpack.c.l.b16 %v725
        %v1309 = vunpack.c.l.b16 %v726
        %v1310 = vunpack.c.l.b16 %v727
        %v1311 = vunpack.c.l.b16 %v728
        %v1312 = vunpack.c.l.b16 %v729
        %v1313 = vunpack.c.l.b16 %v730
        %v1314 = vunpack.c.l.b16 %v731
        %v1315 = vunpack.c.l.b16 %v732
        %v1316 = vunpack.c.l.b16 %v733
        %v1317 = vunpack.c.l.b16 %v734
        %v1318 = vunpack.c.l.b16 %v735
        %v1319 = vunpack.c.l.b16 %v736
        %v1320 = vunpack.c.l.b16 %v737
        %v1321 = vunpack.c.l.b16 %v738
        %v1322 = vunpack.c.l.b16 %v739
        %v1323 = vunpack.c.l.b16 %v740
        %v1324 = vunpack.c.l.b16 %v741
        %v1325 = vunpack.c.l.b16 %v742
        %v1326 = vunpack.c.l.b16 %v743
        %v1327 = vunpack.c.l.b16 %v744
        %v1328 = vunpack.c.l.b16 %v745
        %v1329 = vunpack.c.l.b16 %v746
        %v1330 = vunpack.c.l.b16 %v747
        %v1331 = vunpack.c.l.b16 %v748
        %v1332 = vunpack.c.l.b16 %v749
        %v1333 = vunpack.c.l.b16 %v750
        %v1334 = vunpack.c.l.b16 %v751
        %v1335 = vunpack.c.l.b16 %v752
        %v1336 = vunpack.c.l.b16 %v753
        %v1337 = vunpack.c.l.b16 %v754
        %v1338 = vunpack.c.l.b16 %v755
        %v1339 = vunpack.c.l.b16 %v756
        %v1340 = vunpack.c.l.b16 %v757
        %v1341 = vunpack.c.l.b16 %v758
        %v1342 = vunpack.c.l.b16 %v759
        %v1343 = vunpack.c.l.b16 %v760
        %v1344 = vunpack.c.l.b16 %v761
        %v1345 = vunpack.c.l.b16 %v762
        %v1346 = vunpack.c.l.b16 %v763
        %v1347 = vunpack.c.l.b16 %v764
        %v1348 = vunpack.c.l.b16 %v765
        %v1349 = vunpack.c.l.b16 %v766
        %v1350 = vunpack.c.l.b16 %v767
        %v1351 = vunpack.c.l.b16 %v768
        %v1352 = vunpack.c.l.b16 %v769
        %v1353 = vunpack.c.l.b16 %v770
        %v1354 = vunpack.c.l.b16 %v771
        %v1355 = vunpack.c.l.b16 %v772
        %v1356 = vunpack.c.l.b16 %v773
        %v1357 = vunpack.c.l.b16 %v774
        %v1358 = vunpack.c.l.b16 %v775
        %v1359 = vunpack.c.l.b16 %v776
        %v1360 = vunpack.c.l.b16 %v777
        %v1361 = vunpack.c.l.b16 %v778
        %v1362 = vunpack.c.l.b16 %v779
        %v1363 = vunpack.c.l.b16 %v780
        %v1364 = vunpack.c.l.b16 %v781
        %v1365 = vunpack.c.l.b16 %v782
        %v1366 = vunpack.c.l.b16 %v783
        %v1367 = vunpack.c.l.b16 %v784
        %v1368 = vunpack.c.l.b16 %v785
        %v1369 = vunpack.c.l.b16 %v786
        %v1370 = vunpack.c.l.b16 %v787
        %v1371 = vunpack.c.l.b16 %v788
        %v1372 = vunpack.c.l.b16 %v789
        %v1373 = vunpack.c.l.b16 %v790
        %v1374 = vunpack.c.l.b16 %v791
        %v1375 = vunpack.c.l.b16 %v792
        %v1376 = vunpack.c.l.b16 %v793
        %v1377 = vunpack.c.l.b16 %v794
        %v1378 = vunpack.c.l.b16 %v795
        %v1379 = vunpack.c.l.b16 %v796
        %v1380 = vunpack.c.l.b16 %v797
        %v1381 = vunpack.c.l.b16 %v798
        %v1382 = vunpack.c.l.b16 %v799
        %v1383 = vunpack.c.l.b16 %v800
        %v1384 = vunpack.c.l.b16 %v801
        %v1385 = vunpack.c.l.b16 %v802
        %v1386 = vunpack.c.l.b16 %v803
        %v1387 = vunpack.c.l.b16 %v804
        %v1388 = vunpack.c.l.b16 %v805
        %v1389 = vunpack.c.l.b16 %v806
        %v1390 = vunpack.c.l.b16 %v807
        %v1391 = vunpack.c.l.b16 %v808
        %v1392 = vpack.c.b16 %v1217, %v1216
        %v1393 = vpack.c.b16 %v1219, %v1218
        %v1394 = vpack.c.b16 %v1221, %v1220
        %v1395 = vpack.c.b16 %v1223, %v1222
        %v1396 = vpack.c.b16 %v1225, %v1224
        %v1397 = vpack.c.b16 %v1227, %v1226
        %v1398 = vpack.c.b16 %v1229, %v1228
        %v1399 = vpack.c.b16 %v1231, %v1230
        %v1400 = vpack.c.b16 %v1233, %v1232
        %v1401 = vpack.c.b16 %v1235, %v1234
        %v1402 = vpack.c.b16 %v1237, %v1236
        %v1403 = vpack.c.b16 %v1239, %v1238
        %v1404 = vpack.c.b16 %v1241, %v1240
        %v1405 = vpack.c.b16 %v1243, %v1242
        %v1406 = vpack.c.b16 %v1245, %v1244
        %v1407 = vpack.c.b16 %v1247, %v1246
        %v1408 = vpack.c.b16 %v1249, %v1248
        %v1409 = vpack.c.b16 %v1251, %v1250
        %v1410 = vpack.c.b16 %v1253, %v1252
        %v1411 = vpack.c.b16 %v1255, %v1254
        %v1412 = vpack.c.b16 %v1257, %v1256
        %v1413 = vpack.c.b16 %v1259, %v1258
        %v1414 = vpack.c.b16 %v1261, %v1260
        %v1415 = vpack.c.b16 %v1263, %v1262
        %v1416 = vpack.c.b16 %v1265, %v1264
        %v1417 = vpack.c.b16 %v1267, %v1266
        %v1418 = vpack.c.b16 %v1269, %v1268
        %v1419 = vpack.c.b16 %v1271, %v1270
        %v1420 = vpack.c.b16 %v1273, %v1272
        %v1421 = vpack.c.b16 %v1275, %v1274
        %v1422 = vpack.c.b16 %v1277, %v1276
        %v1423 = vpack.c.b16 %v1279, %v1278
        %v1424 = vpack.c.b16 %v1281, %v1280
        %v1425 = vpack.c.b16 %v1283, %v1282
        %v1426 = vpack.c.b16 %v1285, %v1284
        %v1427 = vpack.c.b16 %v1287, %v1286
        %v1428 = vpack.c.b16 %v1289, %v1288
        %v1429 = vpack.c.b16 %v1291, %v1290
        %v1430 = vpack.c.b16 %v1293, %v1292
        %v1431 = vpack.c.b16 %v1295, %v1294
        %v1432 = vpack.c.b16 %v1297, %v1296
        %v1433 = vpack.c.b16 %v1299, %v1298
        %v1434 = vpack.c.b16 %v1301, %v1300
        %v1435 = vpack.c.b16 %v1303, %v1302
        %v1436 = vpack.c.b16 %v1305, %v1304
        %v1437 = vpack.c.b16 %v1307, %v1306
        %v1438 = vpack.c.b16 %v1309, %v1308
        %v1439 = vpack.c.b16 %v1311, %v1310
        %v1440 = vpack.c.b16 %v1313, %v1312
        %v1441 = vpack.c.b16 %v1315, %v1314
        %v1442 = vpack.c.b16 %v1317, %v1316
        %v1443 = vpack.c.b16 %v1319, %v1318
        %v1444 = vpack.c.b16 %v1321, %v1320
        %v1445 = vpack.c.b16 %v1323, %v1322
        %v1446 = vpack.c.b16 %v1325, %v1324
        %v1447 = vpack.c.b16 %v1327, %v1326
        %v1448 = vpack.c.b16 %v1329, %v1328
        %v1449 = vpack.c.b16 %v1331, %v1330
        %v1450 = vpack.c.b16 %v1333, %v1332
        %v1451 = vpack.c.b16 %v1335, %v1334
        %v1452 = vpack.c.b16 %v1337, %v1336
        %v1453 = vpack.c.b16 %v1339, %v1338
        %v1454 = vpack.c.b16 %v1341, %v1340
        %v1455 = vpack.c.b16 %v1343, %v1342
        %v1456 = vpack.c.b16 %v1345, %v1344
        %v1457 = vpack.c.b16 %v1347, %v1346
        %v1458 = vpack.c.b16 %v1349, %v1348
        %v1459 = vpack.c.b16 %v1351, %v1350
        %v1460 = vpack.c.b16 %v1353, %v1352
        %v1461 = vpack.c.b16 %v1355, %v1354
        %v1462 = vpack.c.b16 %v1357, %v1356
        %v1463 = vpack.c.b16 %v1359, %v1358
        %v1464 = vpack.c.b16 %v1361, %v1360
        %v1465 = vpack.c.b16 %v1363, %v1362
        %v1466 = vpack.c.b16 %v1365, %v1364
        %v1467 = vpack.c.b16 %v1367, %v1366
        %v1468 = vpack.c.b16 %v1369, %v1368
        %v1469 = vpack.c.b16 %v1371, %v1370
        %v1470 = vpack.c.b16 %v1373, %v1372
        %v1471 = vpack.c.b16 %v1375, %v1374
        %v1472 = vpack.c.b16 %v1377, %v1376
        %v1473 = vpack.c.b16 %v1379, %v1378
        %v1474 = vpack.c.b16 %v1381, %v1380
        %v1475 = vpack.c.b16 %v1383, %v1382
        %v1476 = vpack.c.b16 %v1385, %v1384
        %v1477 = vpack.c.b16 %v1387, %v1386
        %v1478 = vpack.c.b16 %v1389, %v1388
        %v1479 = vpack.c.b16 %v1391, %v1390
        %1568 = vmatprep.subr.bf16.mxu0 0
        %1569 = vmatpush1.bf16.msra.mxu0 %v1399
        %1570 = vmatprep.subr.bf16.mxu0 0
        %1571 = vmatpush1.bf16.msra.mxu0 %v1398
        %1572 = vmatprep.subr.bf16.mxu0 0
        %1573 = vmatpush1.bf16.msra.mxu0 %v1397
        %1574 = vmatprep.subr.bf16.mxu0 0
        %1575 = vmatpush1.bf16.msra.mxu0 %v1396
        %1576 = vmatprep.subr.bf16.mxu0 0
        %1577 = vmatpush1.bf16.msra.mxu0 %v1395
        %1578 = vmatprep.subr.bf16.mxu0 0
        %1579 = vmatpush1.bf16.msra.mxu0 %v1394
        %1580 = vmatprep.subr.bf16.mxu0 0
        %1581 = vmatpush1.bf16.msra.mxu0 %v1393
        %1582 = vmatprep.subr.bf16.mxu0 0
        %1583 = vmatpush1.bf16.msra.mxu0 %v1392
        %1584 = vmatprep.subr.bf16.mxu0 0
        %1585 = vmatpush2.bf16.msra.mxu0 %v1407
        %1586 = vmatprep.subr.bf16.mxu0 0
        %1587 = vmatpush2.bf16.msra.mxu0 %v1406
        %1588 = vmatprep.subr.bf16.mxu0 0
        %1589 = vmatpush2.bf16.msra.mxu0 %v1405
        %1590 = vmatprep.subr.bf16.mxu0 0
        %1591 = vmatpush2.bf16.msra.mxu0 %v1404
        %1592 = vmatprep.subr.bf16.mxu0 0
        %1593 = vmatpush2.bf16.msra.mxu0 %v1403
        %1594 = vmatprep.subr.bf16.mxu0 0
        %1595 = vmatpush2.bf16.msra.mxu0 %v1402
        %1596 = vmatprep.subr.bf16.mxu0 0
        %1597 = vmatpush2.bf16.msra.mxu0 %v1401
        %1598 = vmatprep.subr.bf16.mxu0 0
        %1599 = vmatpush2.bf16.msra.mxu0 %v1400
        %1600 = vmatprep.mubr.bf16.mxu0 %v953
        %1601 = vmatmul.mubr.bf16.gmra.mxu0 %v952
        %v1602 = vpop.f32.mrf.mxu0
        %v1603 = vadd.f32 %v814, %v1602
        %v1604 = vpop.f32.mrf.mxu0
        %v1605 = vpop.f32.mrf.mxu0
        %v1606 = vadd.f32 %v814, %v1605
        %v1607 = vpop.f32.mrf.mxu0
        %1608 = vmatprep.mubr.bf16.mxu0 %v964
        %1609 = vmatmul.mubr.bf16.gmra.mxu0 %v963
        %v1610 = vpop.f32.mrf.mxu0
        %v1611 = vadd.f32 %v814, %v1610
        %v1612 = vpop.f32.mrf.mxu0
        %v1613 = vpop.f32.mrf.mxu0
        %v1614 = vadd.f32 %v814, %v1613
        %v1615 = vpop.f32.mrf.mxu0
        %1616 = vmatprep.mubr.bf16.mxu0 %v975
        %1617 = vmatmul.mubr.bf16.gmra.mxu0 %v974
        %v1618 = vpop.f32.mrf.mxu0
        %v1619 = vadd.f32 %v814, %v1618
        %v1620 = vpop.f32.mrf.mxu0
        %v1621 = vpop.f32.mrf.mxu0
        %v1622 = vadd.f32 %v814, %v1621
        %v1623 = vpop.f32.mrf.mxu0
        %1624 = vmatprep.mubr.bf16.mxu0 %v986
        %1625 = vmatmul.mubr.bf16.gmra.mxu0 %v985
        %v1626 = vpop.f32.mrf.mxu0
        %v1627 = vadd.f32 %v814, %v1626
        %v1628 = vpop.f32.mrf.mxu0
        %v1629 = vpop.f32.mrf.mxu0
        %v1630 = vadd.f32 %v814, %v1629
        %v1631 = vpop.f32.mrf.mxu0
        %1632 = vdwg.mxu0
        %1633 = vmatprep.subr.bf16.mxu0 0
        %1634 = vmatpush1.bf16.msra.mxu0 %v1415
        %1635 = vmatprep.subr.bf16.mxu0 0
        %1636 = vmatpush1.bf16.msra.mxu0 %v1414
        %1637 = vmatprep.subr.bf16.mxu0 0
        %1638 = vmatpush1.bf16.msra.mxu0 %v1413
        %1639 = vmatprep.subr.bf16.mxu0 0
        %1640 = vmatpush1.bf16.msra.mxu0 %v1412
        %1641 = vmatprep.subr.bf16.mxu0 0
        %1642 = vmatpush1.bf16.msra.mxu0 %v1411
        %1643 = vmatprep.subr.bf16.mxu0 0
        %1644 = vmatpush1.bf16.msra.mxu0 %v1410
        %1645 = vmatprep.subr.bf16.mxu0 0
        %1646 = vmatpush1.bf16.msra.mxu0 %v1409
        %1647 = vmatprep.subr.bf16.mxu0 0
        %1648 = vmatpush1.bf16.msra.mxu0 %v1408
        %1649 = vmatprep.subr.bf16.mxu0 0
        %1650 = vmatpush2.bf16.msra.mxu0 %v1423
        %1651 = vmatprep.subr.bf16.mxu0 0
        %1652 = vmatpush2.bf16.msra.mxu0 %v1422
        %1653 = vmatprep.subr.bf16.mxu0 0
        %1654 = vmatpush2.bf16.msra.mxu0 %v1421
        %1655 = vmatprep.subr.bf16.mxu0 0
        %1656 = vmatpush2.bf16.msra.mxu0 %v1420
        %1657 = vmatprep.subr.bf16.mxu0 0
        %1658 = vmatpush2.bf16.msra.mxu0 %v1419
        %1659 = vmatprep.subr.bf16.mxu0 0
        %1660 = vmatpush2.bf16.msra.mxu0 %v1418
        %1661 = vmatprep.subr.bf16.mxu0 0
        %1662 = vmatpush2.bf16.msra.mxu0 %v1417
        %1663 = vmatprep.subr.bf16.mxu0 0
        %1664 = vmatpush2.bf16.msra.mxu0 %v1416
        %1665 = vmatprep.mubr.bf16.mxu0 %v955
        %1666 = vmatmul.mubr.bf16.gmra.mxu0 %v954
        %v1667 = vpop.f32.mrf.mxu0
        %v1668 = vadd.f32 %v1603, %v1667
        %v1669 = vpop.f32.mrf.mxu0
        %v1670 = vpop.f32.mrf.mxu0
        %v1671 = vadd.f32 %v1606, %v1670
        %v1672 = vpop.f32.mrf.mxu0
        %1673 = vmatprep.mubr.bf16.mxu0 %v966
        %1674 = vmatmul.mubr.bf16.gmra.mxu0 %v965
        %v1675 = vpop.f32.mrf.mxu0
        %v1676 = vadd.f32 %v1611, %v1675
        %v1677 = vpop.f32.mrf.mxu0
        %v1678 = vpop.f32.mrf.mxu0
        %v1679 = vadd.f32 %v1614, %v1678
        %v1680 = vpop.f32.mrf.mxu0
        %1681 = vmatprep.mubr.bf16.mxu0 %v977
        %1682 = vmatmul.mubr.bf16.gmra.mxu0 %v976
        %v1683 = vpop.f32.mrf.mxu0
        %v1684 = vadd.f32 %v1619, %v1683
        %v1685 = vpop.f32.mrf.mxu0
        %v1686 = vpop.f32.mrf.mxu0
        %v1687 = vadd.f32 %v1622, %v1686
        %v1688 = vpop.f32.mrf.mxu0
        %1689 = vmatprep.mubr.bf16.mxu0 %v988
        %1690 = vmatmul.mubr.bf16.gmra.mxu0 %v987
        %v1691 = vpop.f32.mrf.mxu0
        %v1692 = vadd.f32 %v1627, %v1691
        %v1693 = vpop.f32.mrf.mxu0
        %v1694 = vpop.f32.mrf.mxu0
        %v1695 = vadd.f32 %v1630, %v1694
        %v1696 = vpop.f32.mrf.mxu0
        %1697 = vdwg.mxu0
        %1698 = vmatprep.subr.bf16.mxu0 0
        %1699 = vmatpush1.bf16.msra.mxu0 %v1431
        %1700 = vmatprep.subr.bf16.mxu0 0
        %1701 = vmatpush1.bf16.msra.mxu0 %v1430
        %1702 = vmatprep.subr.bf16.mxu0 0
        %1703 = vmatpush1.bf16.msra.mxu0 %v1429
        %1704 = vmatprep.subr.bf16.mxu0 0
        %1705 = vmatpush1.bf16.msra.mxu0 %v1428
        %1706 = vmatprep.subr.bf16.mxu0 0
        %1707 = vmatpush1.bf16.msra.mxu0 %v1427
        %1708 = vmatprep.subr.bf16.mxu0 0
        %1709 = vmatpush1.bf16.msra.mxu0 %v1426
        %1710 = vmatprep.subr.bf16.mxu0 0
        %1711 = vmatpush1.bf16.msra.mxu0 %v1425
        %1712 = vmatprep.subr.bf16.mxu0 0
        %1713 = vmatpush1.bf16.msra.mxu0 %v1424
        %1714 = vmatprep.subr.bf16.mxu0 0
        %1715 = vmatpush2.bf16.msra.mxu0 %v1439
        %1716 = vmatprep.subr.bf16.mxu0 0
        %1717 = vmatpush2.bf16.msra.mxu0 %v1438
        %1718 = vmatprep.subr.bf16.mxu0 0
        %1719 = vmatpush2.bf16.msra.mxu0 %v1437
        %1720 = vmatprep.subr.bf16.mxu0 0
        %1721 = vmatpush2.bf16.msra.mxu0 %v1436
        %1722 = vmatprep.subr.bf16.mxu0 0
        %1723 = vmatpush2.bf16.msra.mxu0 %v1435
        %1724 = vmatprep.subr.bf16.mxu0 0
        %1725 = vmatpush2.bf16.msra.mxu0 %v1434
        %1726 = vmatprep.subr.bf16.mxu0 0
        %1727 = vmatpush2.bf16.msra.mxu0 %v1433
        %1728 = vmatprep.subr.bf16.mxu0 0
        %1729 = vmatpush2.bf16.msra.mxu0 %v1432
        %1730 = vmatprep.mubr.bf16.mxu0 %v957
        %1731 = vmatmul.mubr.bf16.gmra.mxu0 %v956
        %v1732 = vpop.f32.mrf.mxu0
        %v1733 = vadd.f32 %v1668, %v1732
        %v1734 = vpop.f32.mrf.mxu0
        %v1735 = vpop.f32.mrf.mxu0
        %v1736 = vadd.f32 %v1671, %v1735
        %v1737 = vpop.f32.mrf.mxu0
        %1738 = vmatprep.mubr.bf16.mxu0 %v968
        %1739 = vmatmul.mubr.bf16.gmra.mxu0 %v967
        %v1740 = vpop.f32.mrf.mxu0
        %v1741 = vadd.f32 %v1676, %v1740
        %v1742 = vpop.f32.mrf.mxu0
        %v1743 = vpop.f32.mrf.mxu0
        %v1744 = vadd.f32 %v1679, %v1743
        %v1745 = vpop.f32.mrf.mxu0
        %1746 = vmatprep.mubr.bf16.mxu0 %v979
        %1747 = vmatmul.mubr.bf16.gmra.mxu0 %v978
        %v1748 = vpop.f32.mrf.mxu0
        %v1749 = vadd.f32 %v1684, %v1748
        %v1750 = vpop.f32.mrf.mxu0
        %v1751 = vpop.f32.mrf.mxu0
        %v1752 = vadd.f32 %v1687, %v1751
        %v1753 = vpop.f32.mrf.mxu0
        %1754 = vmatprep.mubr.bf16.mxu0 %v990
        %1755 = vmatmul.mubr.bf16.gmra.mxu0 %v989
        %v1756 = vpop.f32.mrf.mxu0
        %v1757 = vadd.f32 %v1692, %v1756
        %v1758 = vpop.f32.mrf.mxu0
        %v1759 = vpop.f32.mrf.mxu0
        %v1760 = vadd.f32 %v1695, %v1759
        %v1761 = vpop.f32.mrf.mxu0
        %1762 = vdwg.mxu0
        %1763 = vmatprep.subr.bf16.mxu0 0
        %1764 = vmatpush1.bf16.msra.mxu0 %v1447
        %1765 = vmatprep.subr.bf16.mxu0 0
        %1766 = vmatpush1.bf16.msra.mxu0 %v1446
        %1767 = vmatprep.subr.bf16.mxu0 0
        %1768 = vmatpush1.bf16.msra.mxu0 %v1445
        %1769 = vmatprep.subr.bf16.mxu0 0
        %1770 = vmatpush1.bf16.msra.mxu0 %v1444
        %1771 = vmatprep.subr.bf16.mxu0 0
        %1772 = vmatpush1.bf16.msra.mxu0 %v1443
        %1773 = vmatprep.subr.bf16.mxu0 0
        %1774 = vmatpush1.bf16.msra.mxu0 %v1442
        %1775 = vmatprep.subr.bf16.mxu0 0
        %1776 = vmatpush1.bf16.msra.mxu0 %v1441
        %1777 = vmatprep.subr.bf16.mxu0 0
        %1778 = vmatpush1.bf16.msra.mxu0 %v1440
        %1779 = vmatprep.subr.bf16.mxu0 0
        %1780 = vmatpush2.bf16.msra.mxu0 %v1455
        %1781 = vmatprep.subr.bf16.mxu0 0
        %1782 = vmatpush2.bf16.msra.mxu0 %v1454
        %1783 = vmatprep.subr.bf16.mxu0 0
        %1784 = vmatpush2.bf16.msra.mxu0 %v1453
        %1785 = vmatprep.subr.bf16.mxu0 0
        %1786 = vmatpush2.bf16.msra.mxu0 %v1452
        %1787 = vmatprep.subr.bf16.mxu0 0
        %1788 = vmatpush2.bf16.msra.mxu0 %v1451
        %1789 = vmatprep.subr.bf16.mxu0 0
        %1790 = vmatpush2.bf16.msra.mxu0 %v1450
        %1791 = vmatprep.subr.bf16.mxu0 0
        %1792 = vmatpush2.bf16.msra.mxu0 %v1449
        %1793 = vmatprep.subr.bf16.mxu0 0
        %1794 = vmatpush2.bf16.msra.mxu0 %v1448
        %1795 = vmatprep.mubr.bf16.mxu0 %v959
        %1796 = vmatmul.mubr.bf16.gmra.mxu0 %v958
        %v1797 = vpop.f32.mrf.mxu0
        %v1798 = vadd.f32 %v1733, %v1797
        %v1799 = vpop.f32.mrf.mxu0
        %v1800 = vpop.f32.mrf.mxu0
        %v1801 = vadd.f32 %v1736, %v1800
        %v1802 = vpop.f32.mrf.mxu0
        %1803 = vmatprep.mubr.bf16.mxu0 %v970
        %1804 = vmatmul.mubr.bf16.gmra.mxu0 %v969
        %v1805 = vpop.f32.mrf.mxu0
        %v1806 = vadd.f32 %v1741, %v1805
        %v1807 = vpop.f32.mrf.mxu0
        %v1808 = vpop.f32.mrf.mxu0
        %v1809 = vadd.f32 %v1744, %v1808
        %v1810 = vpop.f32.mrf.mxu0
        %1811 = vmatprep.mubr.bf16.mxu0 %v981
        %1812 = vmatmul.mubr.bf16.gmra.mxu0 %v980
        %v1813 = vpop.f32.mrf.mxu0
        %v1814 = vadd.f32 %v1749, %v1813
        %v1815 = vpop.f32.mrf.mxu0
        %v1816 = vpop.f32.mrf.mxu0
        %v1817 = vadd.f32 %v1752, %v1816
        %v1818 = vpop.f32.mrf.mxu0
        %1819 = vmatprep.mubr.bf16.mxu0 %v992
        %1820 = vmatmul.mubr.bf16.gmra.mxu0 %v991
        %v1821 = vpop.f32.mrf.mxu0
        %v1822 = vadd.f32 %v1757, %v1821
        %v1823 = vpop.f32.mrf.mxu0
        %v1824 = vpop.f32.mrf.mxu0
        %v1825 = vadd.f32 %v1760, %v1824
        %v1826 = vpop.f32.mrf.mxu0
        %1827 = vdwg.mxu0
        %1828 = vmatprep.subr.bf16.mxu0 0
        %1829 = vmatpush1.bf16.msra.mxu0 %v1463
        %1830 = vmatprep.subr.bf16.mxu0 0
        %1831 = vmatpush1.bf16.msra.mxu0 %v1462
        %1832 = vmatprep.subr.bf16.mxu0 0
        %1833 = vmatpush1.bf16.msra.mxu0 %v1461
        %1834 = vmatprep.subr.bf16.mxu0 0
        %1835 = vmatpush1.bf16.msra.mxu0 %v1460
        %1836 = vmatprep.subr.bf16.mxu0 0
        %1837 = vmatpush1.bf16.msra.mxu0 %v1459
        %1838 = vmatprep.subr.bf16.mxu0 0
        %1839 = vmatpush1.bf16.msra.mxu0 %v1458
        %1840 = vmatprep.subr.bf16.mxu0 0
        %1841 = vmatpush1.bf16.msra.mxu0 %v1457
        %1842 = vmatprep.subr.bf16.mxu0 0
        %1843 = vmatpush1.bf16.msra.mxu0 %v1456
        %1844 = vmatprep.subr.bf16.mxu0 0
        %1845 = vmatpush2.bf16.msra.mxu0 %v1471
        %1846 = vmatprep.subr.bf16.mxu0 0
        %1847 = vmatpush2.bf16.msra.mxu0 %v1470
        %1848 = vmatprep.subr.bf16.mxu0 0
        %1849 = vmatpush2.bf16.msra.mxu0 %v1469
        %1850 = vmatprep.subr.bf16.mxu0 0
        %1851 = vmatpush2.bf16.msra.mxu0 %v1468
        %1852 = vmatprep.subr.bf16.mxu0 0
        %1853 = vmatpush2.bf16.msra.mxu0 %v1467
        %1854 = vmatprep.subr.bf16.mxu0 0
        %1855 = vmatpush2.bf16.msra.mxu0 %v1466
        %1856 = vmatprep.subr.bf16.mxu0 0
        %1857 = vmatpush2.bf16.msra.mxu0 %v1465
        %1858 = vmatprep.subr.bf16.mxu0 0
        %1859 = vmatpush2.bf16.msra.mxu0 %v1464
        %1860 = vmatprep.mubr.bf16.mxu0 %v961
        %1861 = vmatmul.mubr.bf16.gmra.mxu0 %v960
        %v1862 = vpop.f32.mrf.mxu0
        %v1863 = vadd.f32 %v1798, %v1862
        %v1864 = vpop.f32.mrf.mxu0
        %v1865 = vpop.f32.mrf.mxu0
        %v1866 = vadd.f32 %v1801, %v1865
        %v1867 = vpop.f32.mrf.mxu0
        %1868 = vmatprep.mubr.bf16.mxu0 %v972
        %1869 = vmatmul.mubr.bf16.gmra.mxu0 %v971
        %v1870 = vpop.f32.mrf.mxu0
        %v1871 = vadd.f32 %v1806, %v1870
        %v1872 = vpop.f32.mrf.mxu0
        %v1873 = vpop.f32.mrf.mxu0
        %v1874 = vadd.f32 %v1809, %v1873
        %v1875 = vpop.f32.mrf.mxu0
        %1876 = vmatprep.mubr.bf16.mxu0 %v983
        %1877 = vmatmul.mubr.bf16.gmra.mxu0 %v982
        %v1878 = vpop.f32.mrf.mxu0
        %v1879 = vadd.f32 %v1814, %v1878
        %v1880 = vpop.f32.mrf.mxu0
        %v1881 = vpop.f32.mrf.mxu0
        %v1882 = vadd.f32 %v1817, %v1881
        %v1883 = vpop.f32.mrf.mxu0
        %1884 = vmatprep.mubr.bf16.mxu0 %v994
        %1885 = vmatmul.mubr.bf16.gmra.mxu0 %v993
        %v1886 = vpop.f32.mrf.mxu0
        %v1887 = vadd.f32 %v1822, %v1886
        %v1888 = vpop.f32.mrf.mxu0
        %v1889 = vpop.f32.mrf.mxu0
        %v1890 = vadd.f32 %v1825, %v1889
        %v1891 = vpop.f32.mrf.mxu0
        %1892 = vdwg.mxu0
        %1893 = vmatprep.subr.bf16.mxu0 0
        %1894 = vmatpush1.bf16.msra.mxu0 %v1479
        %1895 = vmatprep.subr.bf16.mxu0 0
        %1896 = vmatpush1.bf16.msra.mxu0 %v1478
        %1897 = vmatprep.subr.bf16.mxu0 0
        %1898 = vmatpush1.bf16.msra.mxu0 %v1477
        %1899 = vmatprep.subr.bf16.mxu0 0
        %1900 = vmatpush1.bf16.msra.mxu0 %v1476
        %1901 = vmatprep.subr.bf16.mxu0 0
        %1902 = vmatpush1.bf16.msra.mxu0 %v1475
        %1903 = vmatprep.subr.bf16.mxu0 0
        %1904 = vmatpush1.bf16.msra.mxu0 %v1474
        %1905 = vmatprep.subr.bf16.mxu0 0
        %1906 = vmatpush1.bf16.msra.mxu0 %v1473
        %1907 = vmatprep.subr.bf16.mxu0 0
        %1908 = vmatpush1.bf16.msra.mxu0 %v1472
        %1909 = vmatprep.subr.bf16.mxu0 0
        %1910 = vmatpush2.bf16.msra.mxu0 0
        %1911 = vmatprep.subr.bf16.mxu0 0
        %1912 = vmatpush2.bf16.msra.mxu0 0
        %1913 = vmatprep.subr.bf16.mxu0 0
        %1914 = vmatpush2.bf16.msra.mxu0 0
        %1915 = vmatprep.subr.bf16.mxu0 0
        %1916 = vmatpush2.bf16.msra.mxu0 0
        %1917 = vmatprep.subr.bf16.mxu0 0
        %1918 = vmatpush2.bf16.msra.mxu0 0
        %1919 = vmatprep.subr.bf16.mxu0 0
        %1920 = vmatpush2.bf16.msra.mxu0 0
        %1921 = vmatprep.subr.bf16.mxu0 0
        %1922 = vmatpush2.bf16.msra.mxu0 0
        %1923 = vmatprep.subr.bf16.mxu0 0
        %1924 = vmatpush2.bf16.msra.mxu0 0
        %1925 = vmatprep.mubr.bf16.mxu0 0
        %1926 = vmatmul.mubr.bf16.gmra.mxu0 %v962
        %v1927 = vpop.f32.mrf.mxu0
        %v1928 = vadd.f32 %v1863, %v1927
        %v1929 = vpop.f32.mrf.mxu0
        %v1930 = vpop.f32.mrf.mxu0
        %v1931 = vadd.f32 %v1866, %v1930
        %v1932 = vpop.f32.mrf.mxu0
        %1933 = vmatprep.mubr.bf16.mxu0 0
        %1934 = vmatmul.mubr.bf16.gmra.mxu0 %v973
        %v1935 = vpop.f32.mrf.mxu0
        %v1936 = vadd.f32 %v1871, %v1935
        %v1937 = vpop.f32.mrf.mxu0
        %v1938 = vpop.f32.mrf.mxu0
        %v1939 = vadd.f32 %v1874, %v1938
        %v1940 = vpop.f32.mrf.mxu0
        %1941 = vmatprep.mubr.bf16.mxu0 0
        %1942 = vmatmul.mubr.bf16.gmra.mxu0 %v984
        %v1943 = vpop.f32.mrf.mxu0
        %v1944 = vadd.f32 %v1879, %v1943
        %v1945 = vpop.f32.mrf.mxu0
        %v1946 = vpop.f32.mrf.mxu0
        %v1947 = vadd.f32 %v1882, %v1946
        %v1948 = vpop.f32.mrf.mxu0
        %1949 = vmatprep.mubr.bf16.mxu0 0
        %1950 = vmatmul.mubr.bf16.gmra.mxu0 %v995
        %v1951 = vpop.f32.mrf.mxu0
        %v1952 = vadd.f32 %v1887, %v1951
        %v1953 = vpop.f32.mrf.mxu0
        %v1954 = vpop.f32.mrf.mxu0
        %v1955 = vadd.f32 %v1890, %v1954
        %v1956 = vpop.f32.mrf.mxu0
        %1957 = vdwg.mxu0
        %vm1958 = vcmp.gt.f32.partialorder %v1928, 0.0
        %vm1959 = vcmp.gt.f32.partialorder %v1931, 0.0
        %vm1960 = vcmp.gt.f32.partialorder %v1936, 0.0
        %vm1961 = vcmp.gt.f32.partialorder %v1939, 0.0
        %vm1962 = vcmp.gt.f32.partialorder %v1944, 0.0
        %vm1963 = vcmp.gt.f32.partialorder %v1947, 0.0
        %vm1964 = vcmp.gt.f32.partialorder %v1952, 0.0
        %vm1965 = vcmp.gt.f32.partialorder %v1955, 0.0
        %v1966 = vmul.f32 %v1928, 10.0
        %v1967 = vmul.f32 %v1931, 10.0
        %v1968 = vmul.f32 %v1936, 10.0
        %v1969 = vmul.f32 %v1939, 10.0
        %v1970 = vmul.f32 %v1944, 10.0
        %v1971 = vmul.f32 %v1947, 10.0
        %v1972 = vmul.f32 %v1952, 10.0
        %v1973 = vmul.f32 %v1955, 10.0
        %v1974 = vmul.f32 %v1966, 1.442695
        %v1975 = vpow.pop %v1974
        %v1976 = vmul.f32 %v1967, 1.442695
        %v1977 = vpow.pop %v1976
        %v1978 = vmul.f32 %v1968, 1.442695
        %v1979 = vpow.pop %v1978
        %v1980 = vmul.f32 %v1969, 1.442695
        %v1981 = vpow.pop %v1980
        %v1982 = vmul.f32 %v1970, 1.442695
        %v1983 = vpow.pop %v1982
        %v1984 = vmul.f32 %v1971, 1.442695
        %v1985 = vpow.pop %v1984
        %v1986 = vmul.f32 %v1972, 1.442695
        %v1987 = vpow.pop %v1986
        %v1988 = vmul.f32 %v1973, 1.442695
        %v1989 = vpow.pop %v1988
        %v1990 = vsub.f32 %v1975, 1.0
        %v1991 = vsub.f32 %v1977, 1.0
        %v1992 = vsub.f32 %v1979, 1.0
        %v1993 = vsub.f32 %v1981, 1.0
        %v1994 = vsub.f32 %v1983, 1.0
        %v1995 = vsub.f32 %v1985, 1.0
        %v1996 = vsub.f32 %v1987, 1.0
        %v1997 = vsub.f32 %v1989, 1.0
        %v1998 = vmul.f32 %v1990, 0.1
        %v1999 = vmul.f32 %v1991, 0.1
        %v2000 = vmul.f32 %v1992, 0.1
        %v2001 = vmul.f32 %v1993, 0.1
        %v2002 = vmul.f32 %v1994, 0.1
        %v2003 = vmul.f32 %v1995, 0.1
        %v2004 = vmul.f32 %v1996, 0.1
        %v2005 = vmul.f32 %v1997, 0.1
        %v2006 = vsel %vm1958, %v1928, %v1998
        %v2007 = vsel %vm1959, %v1931, %v1999
        %v2008 = vsel %vm1960, %v1936, %v2000
        %v2009 = vsel %vm1961, %v1939, %v2001
        %v2010 = vsel %vm1962, %v1944, %v2002
        %v2011 = vsel %vm1963, %v1947, %v2003
        %v2012 = vsel %vm1964, %v1952, %v2004
        %v2013 = vsel %vm1965, %v1955, %v2005
        %v2014 = vpack.c.bf16 %v2007, %v2006
        %v2015 = vpack.c.bf16 %v2009, %v2008
        %v2016 = vpack.c.bf16 %v2011, %v2010
        %v2017 = vpack.c.bf16 %v2013, %v2012
        %v2018 = vld [vmem:[%s553] sm:$0xf]
        %v2019 = vld [vmem:[%s553 + $0x4] sm:$0xf]
        %v2020 = vld [vmem:[%s553 + $0x8] sm:$0xf]
        %v2021 = vld [vmem:[%s553 + $0xc] sm:$0xf]
        %v2022 = vld [vmem:[%s553 + $0x10] sm:$0xf]
        %v2023 = vld [vmem:[%s553 + $0x14] sm:$0xf]
        %v2024 = vld [vmem:[%s553 + $0x18] sm:$0xf]
        %v2025 = vld [vmem:[%s553 + $0x1c] sm:$0xf]
        %v2026 = vld [vmem:[%s558] sm:$0x1]
        %v2028 = vlaneseq
        %v2029 = vshrl.u32 %v2028, 7
        %v2030 = vsub.s32 0, %v2029
        %v2031 = vrot.slane %v2026, %v2030
        %v2041 = vunpack.c.l.b16 %v2018
        %v2042 = vunpack.c.l.b16 %v2019
        %v2043 = vunpack.c.l.b16 %v2020
        %v2044 = vunpack.c.l.b16 %v2021
        %v2045 = vunpack.c.l.b16 %v2022
        %v2046 = vunpack.c.l.b16 %v2023
        %v2047 = vunpack.c.l.b16 %v2024
        %v2048 = vunpack.c.l.b16 %v2025
        %v2049 = vpack.c.b16 %v2042, %v2041
        %v2050 = vpack.c.b16 %v2044, %v2043
        %v2051 = vpack.c.b16 %v2046, %v2045
        %v2052 = vpack.c.b16 %v2048, %v2047
        %vm2057 = vcmask 523264
        %v2059 = vsel %vm2057, %v2014, 0
        %v2062 = vsel %vm2057, %v2015, 0
        %v2065 = vsel %vm2057, %v2016, 0
        %v2068 = vsel %vm2057, %v2017, 0
        %2070 = vmatprep.subr.bf16.mxu0 0
        %2071 = vmatpush1.bf16.msra.mxu0 0
        %2072 = vmatprep.subr.bf16.mxu0 0
        %2073 = vmatpush1.bf16.msra.mxu0 0
        %2074 = vmatprep.subr.bf16.mxu0 0
        %2075 = vmatpush1.bf16.msra.mxu0 0
        %2076 = vmatprep.subr.bf16.mxu0 0
        %2077 = vmatpush1.bf16.msra.mxu0 0
        %2078 = vmatprep.subr.bf16.mxu0 0
        %2079 = vmatpush1.bf16.msra.mxu0 %v2052
        %2080 = vmatprep.subr.bf16.mxu0 0
        %2081 = vmatpush1.bf16.msra.mxu0 %v2051
        %2082 = vmatprep.subr.bf16.mxu0 0
        %2083 = vmatpush1.bf16.msra.mxu0 %v2050
        %2084 = vmatprep.subr.bf16.mxu0 0
        %2085 = vmatpush1.bf16.msra.mxu0 %v2049
        %2086 = vmatprep.subr.bf16.mxu0 0
        %2087 = vmatpush2.bf16.msra.mxu0 0
        %2088 = vmatprep.subr.bf16.mxu0 0
        %2089 = vmatpush2.bf16.msra.mxu0 0
        %2090 = vmatprep.subr.bf16.mxu0 0
        %2091 = vmatpush2.bf16.msra.mxu0 0
        %2092 = vmatprep.subr.bf16.mxu0 0
        %2093 = vmatpush2.bf16.msra.mxu0 0
        %2094 = vmatprep.subr.bf16.mxu0 0
        %2095 = vmatpush2.bf16.msra.mxu0 0
        %2096 = vmatprep.subr.bf16.mxu0 0
        %2097 = vmatpush2.bf16.msra.mxu0 0
        %2098 = vmatprep.subr.bf16.mxu0 0
        %2099 = vmatpush2.bf16.msra.mxu0 0
        %2100 = vmatprep.subr.bf16.mxu0 0
        %2101 = vmatpush2.bf16.msra.mxu0 0
        %2102 = vmatprep.mubr.bf16.mxu0 0
        %2103 = vmatmul.mubr.bf16.gmra.mxu0 %v2059
        %v2104 = vpop.f32.mrf.mxu0
        %v2105 = vadd.f32 %v2031, %v2104
        %v2106 = vpop.f32.mrf.mxu0
        %v2107 = vpop.f32.mrf.mxu0
        %v2108 = vadd.f32 %v2031, %v2107
        %v2109 = vpop.f32.mrf.mxu0
        %2110 = vmatprep.mubr.bf16.mxu0 0
        %2111 = vmatmul.mubr.bf16.gmra.mxu0 %v2062
        %v2112 = vpop.f32.mrf.mxu0
        %v2113 = vadd.f32 %v2031, %v2112
        %v2114 = vpop.f32.mrf.mxu0
        %v2115 = vpop.f32.mrf.mxu0
        %v2116 = vadd.f32 %v2031, %v2115
        %v2117 = vpop.f32.mrf.mxu0
        %2118 = vmatprep.mubr.bf16.mxu0 0
        %2119 = vmatmul.mubr.bf16.gmra.mxu0 %v2065
        %v2120 = vpop.f32.mrf.mxu0
        %v2121 = vadd.f32 %v2031, %v2120
        %v2122 = vpop.f32.mrf.mxu0
        %v2123 = vpop.f32.mrf.mxu0
        %v2124 = vadd.f32 %v2031, %v2123
        %v2125 = vpop.f32.mrf.mxu0
        %2126 = vmatprep.mubr.bf16.mxu0 0
        %2127 = vmatmul.mubr.bf16.gmra.mxu0 %v2068
        %v2128 = vpop.f32.mrf.mxu0
        %v2129 = vadd.f32 %v2031, %v2128
        %v2130 = vpop.f32.mrf.mxu0
        %v2131 = vpop.f32.mrf.mxu0
        %v2132 = vadd.f32 %v2031, %v2131
        %v2133 = vpop.f32.mrf.mxu0
        %2134 = vdwg.mxu0
        %vm2135 = vcmp.gt.f32.partialorder %v2105, 0.0
        %vm2136 = vcmp.gt.f32.partialorder %v2108, 0.0
        %vm2137 = vcmp.gt.f32.partialorder %v2113, 0.0
        %vm2138 = vcmp.gt.f32.partialorder %v2116, 0.0
        %vm2139 = vcmp.gt.f32.partialorder %v2121, 0.0
        %vm2140 = vcmp.gt.f32.partialorder %v2124, 0.0
        %vm2141 = vcmp.gt.f32.partialorder %v2129, 0.0
        %vm2142 = vcmp.gt.f32.partialorder %v2132, 0.0
        %v2143 = vmul.f32 %v2105, 10.0
        %v2144 = vmul.f32 %v2108, 10.0
        %v2145 = vmul.f32 %v2113, 10.0
        %v2146 = vmul.f32 %v2116, 10.0
        %v2147 = vmul.f32 %v2121, 10.0
        %v2148 = vmul.f32 %v2124, 10.0
        %v2149 = vmul.f32 %v2129, 10.0
        %v2150 = vmul.f32 %v2132, 10.0
        %v2151 = vmul.f32 %v2143, 1.442695
        %v2152 = vpow.pop %v2151
        %v2153 = vmul.f32 %v2144, 1.442695
        %v2154 = vpow.pop %v2153
        %v2155 = vmul.f32 %v2145, 1.442695
        %v2156 = vpow.pop %v2155
        %v2157 = vmul.f32 %v2146, 1.442695
        %v2158 = vpow.pop %v2157
        %v2159 = vmul.f32 %v2147, 1.442695
        %v2160 = vpow.pop %v2159
        %v2161 = vmul.f32 %v2148, 1.442695
        %v2162 = vpow.pop %v2161
        %v2163 = vmul.f32 %v2149, 1.442695
        %v2164 = vpow.pop %v2163
        %v2165 = vmul.f32 %v2150, 1.442695
        %v2166 = vpow.pop %v2165
        %v2167 = vsub.f32 %v2152, 1.0
        %v2168 = vsub.f32 %v2154, 1.0
        %v2169 = vsub.f32 %v2156, 1.0
        %v2170 = vsub.f32 %v2158, 1.0
        %v2171 = vsub.f32 %v2160, 1.0
        %v2172 = vsub.f32 %v2162, 1.0
        %v2173 = vsub.f32 %v2164, 1.0
        %v2174 = vsub.f32 %v2166, 1.0
        %v2175 = vmul.f32 %v2167, 0.1
        %v2176 = vmul.f32 %v2168, 0.1
        %v2177 = vmul.f32 %v2169, 0.1
        %v2178 = vmul.f32 %v2170, 0.1
        %v2179 = vmul.f32 %v2171, 0.1
        %v2180 = vmul.f32 %v2172, 0.1
        %v2181 = vmul.f32 %v2173, 0.1
        %v2182 = vmul.f32 %v2174, 0.1
        %v2183 = vsel %vm2135, %v2105, %v2175
        %v2184 = vsel %vm2136, %v2108, %v2176
        %v2185 = vsel %vm2137, %v2113, %v2177
        %v2186 = vsel %vm2138, %v2116, %v2178
        %v2187 = vsel %vm2139, %v2121, %v2179
        %v2188 = vsel %vm2140, %v2124, %v2180
        %v2189 = vsel %vm2141, %v2129, %v2181
        %v2190 = vsel %vm2142, %v2132, %v2182
        %v2191 = vpack.c.bf16 %v2184, %v2183
        %v2192 = vpack.c.bf16 %v2186, %v2185
        %v2193 = vpack.c.bf16 %v2188, %v2187
        %v2194 = vpack.c.bf16 %v2190, %v2189
        %v2195 = vld [vmem:[%s565] sm:$0xf]
        %v2196 = vld [vmem:[%s565 + $0x4] sm:$0xf]
        %v2197 = vld [vmem:[%s565 + $0x8] sm:$0xf]
        %v2198 = vld [vmem:[%s565 + $0xc] sm:$0xf]
        %v2199 = vld [vmem:[%s570] sm:$0x1]
        %v2201 = vlaneseq
        %v2202 = vshrl.u32 %v2201, 7
        %v2203 = vsub.s32 0, %v2202
        %v2204 = vrot.slane %v2199, %v2203
        %v2210 = vunpack.c.l.b16 %v2195
        %v2211 = vunpack.c.l.b16 %v2196
        %v2212 = vunpack.c.l.b16 %v2197
        %v2213 = vunpack.c.l.b16 %v2198
        %v2214 = vpack.c.b16 %v2211, %v2210
        %v2215 = vpack.c.b16 %v2213, %v2212
        %vm2218 = vcmask 261120
        %v2220 = vsel %vm2218, %v2191, 0
        %v2223 = vsel %vm2218, %v2192, 0
        %v2226 = vsel %vm2218, %v2193, 0
        %v2229 = vsel %vm2218, %v2194, 0
        %2231 = vmatprep.subr.bf16.mxu0 0
        %2232 = vmatpush1.bf16.msra.mxu0 0
        %2233 = vmatprep.subr.bf16.mxu0 0
        %2234 = vmatpush1.bf16.msra.mxu0 0
        %2235 = vmatprep.subr.bf16.mxu0 0
        %2236 = vmatpush1.bf16.msra.mxu0 0
        %2237 = vmatprep.subr.bf16.mxu0 0
        %2238 = vmatpush1.bf16.msra.mxu0 0
        %2239 = vmatprep.subr.bf16.mxu0 0
        %2240 = vmatpush1.bf16.msra.mxu0 0
        %2241 = vmatprep.subr.bf16.mxu0 0
        %2242 = vmatpush1.bf16.msra.mxu0 0
        %2243 = vmatprep.subr.bf16.mxu0 0
        %2244 = vmatpush1.bf16.msra.mxu0 %v2215
        %2245 = vmatprep.subr.bf16.mxu0 0
        %2246 = vmatpush1.bf16.msra.mxu0 %v2214
        %2247 = vmatprep.subr.bf16.mxu0 0
        %2248 = vmatpush2.bf16.msra.mxu0 0
        %2249 = vmatprep.subr.bf16.mxu0 0
        %2250 = vmatpush2.bf16.msra.mxu0 0
        %2251 = vmatprep.subr.bf16.mxu0 0
        %2252 = vmatpush2.bf16.msra.mxu0 0
        %2253 = vmatprep.subr.bf16.mxu0 0
        %2254 = vmatpush2.bf16.msra.mxu0 0
        %2255 = vmatprep.subr.bf16.mxu0 0
        %2256 = vmatpush2.bf16.msra.mxu0 0
        %2257 = vmatprep.subr.bf16.mxu0 0
        %2258 = vmatpush2.bf16.msra.mxu0 0
        %2259 = vmatprep.subr.bf16.mxu0 0
        %2260 = vmatpush2.bf16.msra.mxu0 0
        %2261 = vmatprep.subr.bf16.mxu0 0
        %2262 = vmatpush2.bf16.msra.mxu0 0
        %2263 = vmatprep.mubr.bf16.mxu0 0
        %2264 = vmatmul.mubr.bf16.gmra.mxu0 %v2220
        %v2265 = vpop.f32.mrf.mxu0
        %v2266 = vadd.f32 %v2204, %v2265
        %v2267 = vpop.f32.mrf.mxu0
        %v2268 = vpop.f32.mrf.mxu0
        %v2269 = vadd.f32 %v2204, %v2268
        %v2270 = vpop.f32.mrf.mxu0
        %2271 = vmatprep.mubr.bf16.mxu0 0
        %2272 = vmatmul.mubr.bf16.gmra.mxu0 %v2223
        %v2273 = vpop.f32.mrf.mxu0
        %v2274 = vadd.f32 %v2204, %v2273
        %v2275 = vpop.f32.mrf.mxu0
        %v2276 = vpop.f32.mrf.mxu0
        %v2277 = vadd.f32 %v2204, %v2276
        %v2278 = vpop.f32.mrf.mxu0
        %2279 = vmatprep.mubr.bf16.mxu0 0
        %2280 = vmatmul.mubr.bf16.gmra.mxu0 %v2226
        %v2281 = vpop.f32.mrf.mxu0
        %v2282 = vadd.f32 %v2204, %v2281
        %v2283 = vpop.f32.mrf.mxu0
        %v2284 = vpop.f32.mrf.mxu0
        %v2285 = vadd.f32 %v2204, %v2284
        %v2286 = vpop.f32.mrf.mxu0
        %2287 = vmatprep.mubr.bf16.mxu0 0
        %2288 = vmatmul.mubr.bf16.gmra.mxu0 %v2229
        %v2289 = vpop.f32.mrf.mxu0
        %v2290 = vadd.f32 %v2204, %v2289
        %v2291 = vpop.f32.mrf.mxu0
        %v2292 = vpop.f32.mrf.mxu0
        %v2293 = vadd.f32 %v2204, %v2292
        %v2294 = vpop.f32.mrf.mxu0
        %2295 = vdwg.mxu0
        %vm2296 = vcmp.gt.f32.partialorder %v2266, 0.0
        %vm2297 = vcmp.gt.f32.partialorder %v2269, 0.0
        %vm2298 = vcmp.gt.f32.partialorder %v2274, 0.0
        %vm2299 = vcmp.gt.f32.partialorder %v2277, 0.0
        %vm2300 = vcmp.gt.f32.partialorder %v2282, 0.0
        %vm2301 = vcmp.gt.f32.partialorder %v2285, 0.0
        %vm2302 = vcmp.gt.f32.partialorder %v2290, 0.0
        %vm2303 = vcmp.gt.f32.partialorder %v2293, 0.0
        %v2304 = vmul.f32 %v2266, 10.0
        %v2305 = vmul.f32 %v2269, 10.0
        %v2306 = vmul.f32 %v2274, 10.0
        %v2307 = vmul.f32 %v2277, 10.0
        %v2308 = vmul.f32 %v2282, 10.0
        %v2309 = vmul.f32 %v2285, 10.0
        %v2310 = vmul.f32 %v2290, 10.0
        %v2311 = vmul.f32 %v2293, 10.0
        %v2312 = vmul.f32 %v2304, 1.442695
        %v2313 = vpow.pop %v2312
        %v2314 = vmul.f32 %v2305, 1.442695
        %v2315 = vpow.pop %v2314
        %v2316 = vmul.f32 %v2306, 1.442695
        %v2317 = vpow.pop %v2316
        %v2318 = vmul.f32 %v2307, 1.442695
        %v2319 = vpow.pop %v2318
        %v2320 = vmul.f32 %v2308, 1.442695
        %v2321 = vpow.pop %v2320
        %v2322 = vmul.f32 %v2309, 1.442695
        %v2323 = vpow.pop %v2322
        %v2324 = vmul.f32 %v2310, 1.442695
        %v2325 = vpow.pop %v2324
        %v2326 = vmul.f32 %v2311, 1.442695
        %v2327 = vpow.pop %v2326
        %v2328 = vsub.f32 %v2313, 1.0
        %v2329 = vsub.f32 %v2315, 1.0
        %v2330 = vsub.f32 %v2317, 1.0
        %v2331 = vsub.f32 %v2319, 1.0
        %v2332 = vsub.f32 %v2321, 1.0
        %v2333 = vsub.f32 %v2323, 1.0
        %v2334 = vsub.f32 %v2325, 1.0
        %v2335 = vsub.f32 %v2327, 1.0
        %v2336 = vmul.f32 %v2328, 0.1
        %v2337 = vmul.f32 %v2329, 0.1
        %v2338 = vmul.f32 %v2330, 0.1
        %v2339 = vmul.f32 %v2331, 0.1
        %v2340 = vmul.f32 %v2332, 0.1
        %v2341 = vmul.f32 %v2333, 0.1
        %v2342 = vmul.f32 %v2334, 0.1
        %v2343 = vmul.f32 %v2335, 0.1
        %v2344 = vsel %vm2296, %v2266, %v2336
        %v2345 = vsel %vm2297, %v2269, %v2337
        %v2346 = vsel %vm2298, %v2274, %v2338
        %v2347 = vsel %vm2299, %v2277, %v2339
        %v2348 = vsel %vm2300, %v2282, %v2340
        %v2349 = vsel %vm2301, %v2285, %v2341
        %v2350 = vsel %vm2302, %v2290, %v2342
        %v2351 = vsel %vm2303, %v2293, %v2343
        %v2352 = vld [vmem:[%s534] sm:$0xff]
        %v2353 = vld [vmem:[%s534 + $0x8] sm:$0xff]
        %v2354 = vld [vmem:[%s534 + $0x10] sm:$0xff]
        %v2355 = vld [vmem:[%s534 + $0x18] sm:$0xff]
        %v2356 = vld [vmem:[%s534 + $0x20] sm:$0xff]
        %v2357 = vld [vmem:[%s534 + $0x28] sm:$0xff]
        %v2358 = vld [vmem:[%s534 + $0x30] sm:$0xff]
        %v2359 = vld [vmem:[%s534 + $0x38] sm:$0xff]
        %2361 = vset.pattern.permute.xlu0 0
        %2362 = vperm.xlu0 %2361, %v2352
        %v2363 = vpop.permute.xlu0 %2362
        %2366 = vset.pattern.permute.xlu0 0
        %2367 = vperm.xlu0 %2366, %v2353
        %v2368 = vpop.permute.xlu0 %2367
        %2371 = vset.pattern.permute.xlu0 0
        %2372 = vperm.xlu0 %2371, %v2354
        %v2373 = vpop.permute.xlu0 %2372
        %2376 = vset.pattern.permute.xlu0 0
        %2377 = vperm.xlu0 %2376, %v2355
        %v2378 = vpop.permute.xlu0 %2377
        %2381 = vset.pattern.permute.xlu0 0
        %2382 = vperm.xlu0 %2381, %v2356
        %v2383 = vpop.permute.xlu0 %2382
        %2386 = vset.pattern.permute.xlu0 0
        %2387 = vperm.xlu0 %2386, %v2357
        %v2388 = vpop.permute.xlu0 %2387
        %2391 = vset.pattern.permute.xlu0 0
        %2392 = vperm.xlu0 %2391, %v2358
        %v2393 = vpop.permute.xlu0 %2392
        %2396 = vset.pattern.permute.xlu0 0
        %2397 = vperm.xlu0 %2396, %v2359
        %v2398 = vpop.permute.xlu0 %2397
        %v2400 = vmul.f32 %v2344, %v2363
        %v2401 = vmul.f32 %v2345, %v2368
        %v2402 = vmul.f32 %v2346, %v2373
        %v2403 = vmul.f32 %v2347, %v2378
        %v2404 = vmul.f32 %v2348, %v2383
        %v2405 = vmul.f32 %v2349, %v2388
        %v2406 = vmul.f32 %v2350, %v2393
        %v2407 = vmul.f32 %v2351, %v2398
        %vm2408 = vcmask 130048
        %v2409 = vsel %vm2408, %v2400, 0.0
        %v2410 = vrot.slane %v2409, 4
        %v2411 = vadd.f32 %v2409, %v2410
        %v2412 = vrot.slane %v2411, 2
        %v2413 = vadd.f32 %v2411, %v2412
        %v2414 = vrot.slane %v2413, 1
        %v2415 = vadd.f32 %v2413, %v2414
        %v2416 = vsel %vm2408, %v2401, 0.0
        %v2417 = vrot.slane %v2416, 4
        %v2418 = vadd.f32 %v2416, %v2417
        %v2419 = vrot.slane %v2418, 2
        %v2420 = vadd.f32 %v2418, %v2419
        %v2421 = vrot.slane %v2420, 1
        %v2422 = vadd.f32 %v2420, %v2421
        %v2423 = vsel %vm2408, %v2402, 0.0
        %v2424 = vrot.slane %v2423, 4
        %v2425 = vadd.f32 %v2423, %v2424
        %v2426 = vrot.slane %v2425, 2
        %v2427 = vadd.f32 %v2425, %v2426
        %v2428 = vrot.slane %v2427, 1
        %v2429 = vadd.f32 %v2427, %v2428
        %v2430 = vsel %vm2408, %v2403, 0.0
        %v2431 = vrot.slane %v2430, 4
        %v2432 = vadd.f32 %v2430, %v2431
        %v2433 = vrot.slane %v2432, 2
        %v2434 = vadd.f32 %v2432, %v2433
        %v2435 = vrot.slane %v2434, 1
        %v2436 = vadd.f32 %v2434, %v2435
        %v2437 = vsel %vm2408, %v2404, 0.0
        %v2438 = vrot.slane %v2437, 4
        %v2439 = vadd.f32 %v2437, %v2438
        %v2440 = vrot.slane %v2439, 2
        %v2441 = vadd.f32 %v2439, %v2440
        %v2442 = vrot.slane %v2441, 1
        %v2443 = vadd.f32 %v2441, %v2442
        %v2444 = vsel %vm2408, %v2405, 0.0
        %v2445 = vrot.slane %v2444, 4
        %v2446 = vadd.f32 %v2444, %v2445
        %v2447 = vrot.slane %v2446, 2
        %v2448 = vadd.f32 %v2446, %v2447
        %v2449 = vrot.slane %v2448, 1
        %v2450 = vadd.f32 %v2448, %v2449
        %v2451 = vsel %vm2408, %v2406, 0.0
        %v2452 = vrot.slane %v2451, 4
        %v2453 = vadd.f32 %v2451, %v2452
        %v2454 = vrot.slane %v2453, 2
        %v2455 = vadd.f32 %v2453, %v2454
        %v2456 = vrot.slane %v2455, 1
        %v2457 = vadd.f32 %v2455, %v2456
        %v2458 = vsel %vm2408, %v2407, 0.0
        %v2459 = vrot.slane %v2458, 4
        %v2460 = vadd.f32 %v2458, %v2459
        %v2461 = vrot.slane %v2460, 2
        %v2462 = vadd.f32 %v2460, %v2461
        %v2463 = vrot.slane %v2462, 1
        %v2464 = vadd.f32 %v2462, %v2463
        %vm2465 = vcmask 7168
        %v2466 = vsel %vm2465, %v2352, 0.0
        %v2467 = vrot.slane %v2466, 4
        %v2468 = vadd.f32 %v2466, %v2467
        %v2469 = vrot.slane %v2468, 2
        %v2470 = vadd.f32 %v2468, %v2469
        %v2471 = vrot.slane %v2470, 1
        %v2472 = vadd.f32 %v2470, %v2471
        %v2473 = vsel %vm2465, %v2353, 0.0
        %v2474 = vrot.slane %v2473, 4
        %v2475 = vadd.f32 %v2473, %v2474
        %v2476 = vrot.slane %v2475, 2
        %v2477 = vadd.f32 %v2475, %v2476
        %v2478 = vrot.slane %v2477, 1
        %v2479 = vadd.f32 %v2477, %v2478
        %v2480 = vsel %vm2465, %v2354, 0.0
        %v2481 = vrot.slane %v2480, 4
        %v2482 = vadd.f32 %v2480, %v2481
        %v2483 = vrot.slane %v2482, 2
        %v2484 = vadd.f32 %v2482, %v2483
        %v2485 = vrot.slane %v2484, 1
        %v2486 = vadd.f32 %v2484, %v2485
        %v2487 = vsel %vm2465, %v2355, 0.0
        %v2488 = vrot.slane %v2487, 4
        %v2489 = vadd.f32 %v2487, %v2488
        %v2490 = vrot.slane %v2489, 2
        %v2491 = vadd.f32 %v2489, %v2490
        %v2492 = vrot.slane %v2491, 1
        %v2493 = vadd.f32 %v2491, %v2492
        %v2494 = vsel %vm2465, %v2356, 0.0
        %v2495 = vrot.slane %v2494, 4
        %v2496 = vadd.f32 %v2494, %v2495
        %v2497 = vrot.slane %v2496, 2
        %v2498 = vadd.f32 %v2496, %v2497
        %v2499 = vrot.slane %v2498, 1
        %v2500 = vadd.f32 %v2498, %v2499
        %v2501 = vsel %vm2465, %v2357, 0.0
        %v2502 = vrot.slane %v2501, 4
        %v2503 = vadd.f32 %v2501, %v2502
        %v2504 = vrot.slane %v2503, 2
        %v2505 = vadd.f32 %v2503, %v2504
        %v2506 = vrot.slane %v2505, 1
        %v2507 = vadd.f32 %v2505, %v2506
        %v2508 = vsel %vm2465, %v2358, 0.0
        %v2509 = vrot.slane %v2508, 4
        %v2510 = vadd.f32 %v2508, %v2509
        %v2511 = vrot.slane %v2510, 2
        %v2512 = vadd.f32 %v2510, %v2511
        %v2513 = vrot.slane %v2512, 1
        %v2514 = vadd.f32 %v2512, %v2513
        %v2515 = vsel %vm2465, %v2359, 0.0
        %v2516 = vrot.slane %v2515, 4
        %v2517 = vadd.f32 %v2515, %v2516
        %v2518 = vrot.slane %v2517, 2
        %v2519 = vadd.f32 %v2517, %v2518
        %v2520 = vrot.slane %v2519, 1
        %v2521 = vadd.f32 %v2519, %v2520
        %v2522 = vpack.c.bf16 %v2415, %v2415
        %v2523 = vpack.c.bf16 %v2422, %v2422
        %v2524 = vpack.c.bf16 %v2429, %v2429
        %v2525 = vpack.c.bf16 %v2436, %v2436
        %v2526 = vpack.c.bf16 %v2443, %v2443
        %v2527 = vpack.c.bf16 %v2450, %v2450
        %v2528 = vpack.c.bf16 %v2457, %v2457
        %v2529 = vpack.c.bf16 %v2464, %v2464
        %v2530 = vld [vmem:[%s577] sm:$0xf]
        %v2531 = vld [vmem:[%s577 + $0x4] sm:$0xf]
        %v2532 = vld [vmem:[%s582] sm:$0x1]
        %2534 = vset.pattern.permute.xlu0 0
        %2535 = vperm.xlu0 %2534, %v2472
        %v2536 = vpop.permute.xlu0 %2535
        %2539 = vset.pattern.permute.xlu0 0
        %2540 = vperm.xlu0 %2539, %v2479
        %v2541 = vpop.permute.xlu0 %2540
        %2544 = vset.pattern.permute.xlu0 0
        %2545 = vperm.xlu0 %2544, %v2486
        %v2546 = vpop.permute.xlu0 %2545
        %2549 = vset.pattern.permute.xlu0 0
        %2550 = vperm.xlu0 %2549, %v2493
        %v2551 = vpop.permute.xlu0 %2550
        %2554 = vset.pattern.permute.xlu0 0
        %2555 = vperm.xlu0 %2554, %v2500
        %v2556 = vpop.permute.xlu0 %2555
        %2559 = vset.pattern.permute.xlu0 0
        %2560 = vperm.xlu0 %2559, %v2507
        %v2561 = vpop.permute.xlu0 %2560
        %2564 = vset.pattern.permute.xlu0 0
        %2565 = vperm.xlu0 %2564, %v2514
        %v2566 = vpop.permute.xlu0 %2565
        %2569 = vset.pattern.permute.xlu0 0
        %2570 = vperm.xlu0 %2569, %v2521
        %v2571 = vpop.permute.xlu0 %2570
        %v2574 = vlaneseq
        %v2575 = vshrl.u32 %v2574, 7
        %v2576 = vsub.s32 0, %v2575
        %v2577 = vrot.slane %v2532, %v2576
        %v2579 = vmul.f32 %v2536, %v2577
        %v2580 = vmul.f32 %v2541, %v2577
        %v2581 = vmul.f32 %v2546, %v2577
        %v2582 = vmul.f32 %v2551, %v2577
        %v2583 = vmul.f32 %v2556, %v2577
        %v2584 = vmul.f32 %v2561, %v2577
        %v2585 = vmul.f32 %v2566, %v2577
        %v2586 = vmul.f32 %v2571, %v2577
        %v2595 = vunpack.c.l.b16 %v2522
        %v2596 = vunpack.c.l.b16 %v2523
        %v2597 = vunpack.c.l.b16 %v2524
        %v2598 = vunpack.c.l.b16 %v2525
        %v2599 = vunpack.c.l.b16 %v2526
        %v2600 = vunpack.c.l.b16 %v2527
        %v2601 = vunpack.c.l.b16 %v2528
        %v2602 = vunpack.c.l.b16 %v2529
        %vm2603 = vcmask 1041409
        %v2604 = vsel %vm2603, %v2596, %v2595
        %vm2605 = vcmask 1042434
        %v2606 = vsel %vm2605, %v2597, %v2604
        %vm2607 = vcmask 1043459
        %v2608 = vsel %vm2607, %v2598, %v2606
        %vm2609 = vcmask 1044484
        %v2610 = vsel %vm2609, %v2599, %v2608
        %vm2611 = vcmask 1045509
        %v2612 = vsel %vm2611, %v2600, %v2610
        %vm2613 = vcmask 1046534
        %v2614 = vsel %vm2613, %v2601, %v2612
        %vm2615 = vcmask 1047559
        %v2616 = vsel %vm2615, %v2602, %v2614
        %v2617 = vpack.c.b16 %v2616, %v2616
        %v2620 = vunpack.c.l.b16 %v2530
        %v2621 = vunpack.c.l.b16 %v2531
        %v2622 = vpack.c.b16 %v2621, %v2620
        %v2632 = vrot.slane %v2580, 7
        %v2633 = vsel %vm2603, %v2632, %v2579
        %v2634 = vrot.slane %v2581, 6
        %v2635 = vsel %vm2605, %v2634, %v2633
        %v2636 = vrot.slane %v2582, 5
        %v2637 = vsel %vm2607, %v2636, %v2635
        %v2638 = vrot.slane %v2583, 4
        %v2639 = vsel %vm2609, %v2638, %v2637
        %v2640 = vrot.slane %v2584, 3
        %v2641 = vsel %vm2611, %v2640, %v2639
        %v2642 = vrot.slane %v2585, 2
        %v2643 = vsel %vm2613, %v2642, %v2641
        %v2644 = vrot.slane %v2586, 1
        %v2645 = vsel %vm2615, %v2644, %v2643
        %v2648 = vsel %vm2408, %v2617, 0
        %2650 = vmatprep.subr.bf16.mxu0 0
        %2651 = vmatpush1.bf16.msra.mxu0 0
        %2652 = vmatprep.subr.bf16.mxu0 0
        %2653 = vmatpush1.bf16.msra.mxu0 0
        %2654 = vmatprep.subr.bf16.mxu0 0
        %2655 = vmatpush1.bf16.msra.mxu0 0
        %2656 = vmatprep.subr.bf16.mxu0 0
        %2657 = vmatpush1.bf16.msra.mxu0 0
        %2658 = vmatprep.subr.bf16.mxu0 0
        %2659 = vmatpush1.bf16.msra.mxu0 0
        %2660 = vmatprep.subr.bf16.mxu0 0
        %2661 = vmatpush1.bf16.msra.mxu0 0
        %2662 = vmatprep.subr.bf16.mxu0 0
        %2663 = vmatpush1.bf16.msra.mxu0 0
        %2664 = vmatprep.subr.bf16.mxu0 0
        %2665 = vmatpush1.bf16.msra.mxu0 %v2622
        %2666 = vmatprep.subr.bf16.mxu0 0
        %2667 = vmatpush2.bf16.msra.mxu0 0
        %2668 = vmatprep.subr.bf16.mxu0 0
        %2669 = vmatpush2.bf16.msra.mxu0 0
        %2670 = vmatprep.subr.bf16.mxu0 0
        %2671 = vmatpush2.bf16.msra.mxu0 0
        %2672 = vmatprep.subr.bf16.mxu0 0
        %2673 = vmatpush2.bf16.msra.mxu0 0
        %2674 = vmatprep.subr.bf16.mxu0 0
        %2675 = vmatpush2.bf16.msra.mxu0 0
        %2676 = vmatprep.subr.bf16.mxu0 0
        %2677 = vmatpush2.bf16.msra.mxu0 0
        %2678 = vmatprep.subr.bf16.mxu0 0
        %2679 = vmatpush2.bf16.msra.mxu0 0
        %2680 = vmatprep.subr.bf16.mxu0 0
        %2681 = vmatpush2.bf16.msra.mxu0 0
        %2682 = vmatprep.mubr.bf16.mxu0 0
        %2683 = vmatmul.mubr.bf16.gmra.mxu0 %v2648
        %v2684 = vpop.f32.mrf.mxu0
        %v2685 = vadd.f32 %v2645, %v2684
        %v2686 = vpop.f32.mrf.mxu0
        %v2687 = vpop.f32.mrf.mxu0
        %v2688 = vpop.f32.mrf.mxu0
        %2689 = vdwg.mxu0
        %2690 = vst [vmem:[%s522] sm:$0xff] %v2685
        %s2691 = sand.u32 %s315, 1
        %s2692 = scalar_lea.sflag [#allocation5], %s2691
        %s2693 = sand.u32 %s315, 1
        %s2694 = smul.addr %s2693, 8
        %s2695 = scalar_lea.vmem [#allocation4], %s2694
        // Predicated region
        $region61: #{tpu_custom_call.1} parent=59 // pred_check
          %p2696 = pneg %p325
        $region62: #{tpu_custom_call.1} parent=59 // pred_check_branch
          %2698 = sbr.rel (%p2696) target = $region64
        $region63: #{tpu_custom_call.1} parent=59 // pred_region
          %s2700 = ssub.s32 128, 128
          %2701 = vsyncadd %s2692, %s2700
          %s2702 = smul.addr %s31, 128
          %s2703 = scalar_lea.hbm %s11, %s2702
          %s2705 = sshll.u32 %s2695, 4
          %s2706 = int_to_ptr.vmem [resolvable:$true] %s2705
          %2708 = dma.vmem_to_hbm [thread:$0]  %s2706, 128, %s2703, %s2692
        $region64: #{tpu_custom_call.1} parent=59 // pred_fallthru
          _
      $region60: #{tpu_custom_call.1} parent=5 // pred_fallthru
        _
      %p2709 = scmp.le.s32.totalorder 2, %s26
      // Predicated region
      $region65: #{tpu_custom_call.1} parent=5 // pred_check
        %p2710 = pneg %p2709
      $region66: #{tpu_custom_call.1} parent=5 // pred_check_branch
        %2712 = sbr.rel (%p2710) target = $region68
      $region67: #{tpu_custom_call.1} parent=5 // pred_region
        %s2713 = ssub.s32 %s26, 2
        // Predicated region
        $region69: #{tpu_custom_call.1} parent=67 // pred_check
          %p2714 = pneg %p331
        $region70: #{tpu_custom_call.1} parent=67 // pred_check_branch
          %2716 = sbr.rel (%p2714) target = $region72
        $region71: #{tpu_custom_call.1} parent=67 // pred_region
          %s2717 = sand.u32 %s316, 1
          %s2718 = scalar_lea.sflag [#allocation5], %s2717
          %s2719 = sand.u32 %s316, 1
          %s2720 = smul.addr %s2719, 8
          %s2721 = scalar_lea.vmem [#allocation4], %s2720
          %2722 = dma.done %s2718, 128
        $region72: #{tpu_custom_call.1} parent=67 // pred_fallthru
          _
      $region68: #{tpu_custom_call.1} parent=5 // pred_fallthru
        _
    $region6: #{tpu_custom_call.1} parent=1 // loop_footer
      %s30 = sadd.s32 1, %s26
    $region7: #{tpu_custom_call.1} parent=1 // loop_footer_branch
      %25 = sbr.rel target = $region3
    $region8: #{tpu_custom_call.1} parent=1 // loop_exit
      _
    %2723 = vsyncpa [#allocation5], 1
    %s2724 = scalar_lea.sflag [#allocation5], 1
    %2725 = vsyncpa %s2724, 1

</llo_original>
